<compile_context>
chip_gen: v5e
topology: v5e:2x2
jax: 0.10.0
libtpu: 0.0.40
codegen_flags: <defaults>
</compile_context>

<pallas_src>
import functools
import math

import jax
import jax.numpy as jnp
from jax.experimental import pallas as pl
from jax.experimental.pallas import tpu as pltpu

HIDDEN = 256


def _round_up(x, m):
    return (x + m - 1) // m * m


# --------------------------------------------------------------------------- kernel
def _mhdqn_kernel(
    x_ref,        # [TB, IN_PAD]            bf16  (lane-dense, zero-padded input)
    w1_ref,       # [IN_PAD, H]             bf16  (zero rows beyond num_inputs)
    btr_ref,      # [5, 1, H]               f32   (all 5 trunk biases)
    w25_ref,      # [4, H, H]               bf16  (trunk layers 2..5)
    wva1_ref,     # [H, 2H]                 bf16  (wv1 | wa1 fused)
    bva1_ref,     # [1, 2H]                 f32
    wva2_ref,     # [2H, OUT_W]             bf16  (cols[0,A)=adv, col A=value,
                  #                                col A+1=adv-sum, rest exactly 0)
    bva2_ref,     # [1, OUT_W]              f32
    out_ref,      # [TB, OUT_W]             bf16  (wrapper slices cols [0, A))
    *,
    num_actions,
):
    # Trunk layer 1
    h = jnp.dot(x_ref[...], w1_ref[...], preferred_element_type=jnp.float32)
    h = jnp.maximum(h + btr_ref[0], 0.0)

    # Trunk layers 2..5 (packed weight slab, static unroll)
    for i in range(4):
        h = jnp.dot(h.astype(jnp.bfloat16), w25_ref[i],
                    preferred_element_type=jnp.float32)
        h = jnp.maximum(h + btr_ref[i + 1], 0.0)

    # Fused value|advantage hidden layer: one [H, 2H] matmul instead of two [H, H]
    hva = jnp.dot(h.astype(jnp.bfloat16), wva1_ref[...],
                  preferred_element_type=jnp.float32)
    hva = jnp.maximum(hva + bva1_ref[...], 0.0)

    # Fused output layer.  q[:, 0:A] = advantage, q[:, A] = value,
    # q[:, A+1] = sum_j(advantage_j) (baked into the weight slab), q[:, >A+1] = 0.
    q = jnp.dot(hva.astype(jnp.bfloat16), wva2_ref[...],
                preferred_element_type=jnp.float32) + bva2_ref[...]

    v = q[:, num_actions:num_actions + 1]                       # [TB, 1]
    a_mean = q[:, num_actions + 1:num_actions + 2] * (1.0 / num_actions)

    # Dueling combine; lane-dense (unmasked) store.  Columns >= num_actions are
    # NOT meaningful (they equal v - a_mean etc.) — the wrapper slices [0, A).
    out_ref[...] = (q + v - a_mean).astype(out_ref.dtype)


# --------------------------------------------------------------------------- params
def _init_linear(key, fan_in, fan_out):
    """PyTorch nn.Linear default init: U(-1/sqrt(fan_in), 1/sqrt(fan_in)).

    Weights are kept as f32 masters ([fan_in, fan_out], pre-transposed); bias is
    [1, fan_out] f32.  bf16 casting happens once in pack_mhdqn_params.
    """
    kw, kb = jax.random.split(key)
    bound = 1.0 / math.sqrt(fan_in)
    w = jax.random.uniform(kw, (fan_in, fan_out), jnp.float32, -bound, bound)
    b = jax.random.uniform(kb, (1, fan_out), jnp.float32, -bound, bound)
    return w, b


def init_mhdqn_params(key, num_inputs, num_actions, num_head, hidden=HIDDEN):
    keys = jax.random.split(key, 5 + 4 * num_head)
    params = {}
    dims = [(num_inputs, hidden)] + [(hidden, hidden)] * 4
    params["trunk"] = [_init_linear(keys[i], fi, fo) for i, (fi, fo) in enumerate(dims)]
    heads = []
    for h in range(num_head):
        k0, k1, k2, k3 = keys[5 + 4 * h: 5 + 4 * (h + 1)]
        heads.append(
            {
                "v1": _init_linear(k0, hidden, hidden),
                "v2": _init_linear(k1, hidden, 1),
                "a1": _init_linear(k2, hidden, hidden),
                "a2": _init_linear(k3, hidden, num_actions),
            }
        )
    params["heads"] = heads
    return params


def pack_mhdqn_params(params, head_index):
    """One-time packing of params + selected head into kernel-ready slabs.

    Call this when the parameters change (NOT per forward) — the forward only
    launches the Pallas kernel on the returned pytree.
    """
    hidden = HIDDEN
    trunk = params["trunk"]
    head = params["heads"][head_index]
    num_inputs = trunk[0][0].shape[0]
    num_actions = head["a2"][0].shape[1]
    in_pad = _round_up(max(num_inputs, 1), 128)        # lane-dense input width
    out_w = _round_up(num_actions + 2, 128)            # +1 value col, +1 adv-sum col

    b16 = lambda w: w.astype(jnp.bfloat16)

    # Trunk slabs
    w1 = jnp.zeros((in_pad, hidden), jnp.bfloat16)
    w1 = w1.at[:num_inputs, :].set(b16(trunk[0][0]))                # zero-padded rows
    w25 = jnp.stack([b16(trunk[i][0]) for i in range(1, 5)])        # [4, H, H]
    btr = jnp.stack([trunk[i][1] for i in range(5)])                # [5, 1, H] f32

    # Head slabs (fused value|advantage)
    wv1, bv1 = head["v1"]
    wv2, bv2 = head["v2"]
    wa1, ba1 = head["a1"]
    wa2, ba2 = head["a2"]
    wva1 = jnp.concatenate([b16(wv1), b16(wa1)], axis=1)            # [H, 2H]
    bva1 = jnp.concatenate([bv1, ba1], axis=1)                      # [1, 2H]

    wa2_b = b16(wa2)
    wva2 = jnp.zeros((2 * hidden, out_w), jnp.bfloat16)
    wva2 = wva2.at[hidden:, :num_actions].set(wa2_b)                # advantage cols
    wva2 = wva2.at[:hidden, num_actions].set(b16(wv2)[:, 0])        # value col
    wva2 = wva2.at[hidden:, num_actions + 1].set(                   # baked adv-sum col
        wa2_b.astype(jnp.float32).sum(axis=1).astype(jnp.bfloat16))
    bva2 = jnp.zeros((1, out_w), jnp.float32)
    bva2 = bva2.at[0, :num_actions].set(ba2[0])
    bva2 = bva2.at[0, num_actions].set(bv2[0, 0])
    bva2 = bva2.at[0, num_actions + 1].set(jnp.sum(ba2))

    return {
        "w1": w1, "btr": btr, "w25": w25,
        "wva1": wva1, "bva1": bva1, "wva2": wva2, "bva2": bva2,
    }


# --------------------------------------------------------------------------- forward
@functools.partial(jax.jit, static_argnames=("num_actions", "tile_b"))
def mhdqn_forward(packed, x, num_actions, tile_b=2048):
    """Pallas forward of MHDQN.forward(x, head_index) on pre-packed params.

    x: [B, num_inputs] float32.  Returns [B, num_actions] float32.
    """
    B, num_inputs = x.shape
    in_pad, hidden = packed["w1"].shape
    out_w = packed["wva2"].shape[1]

    # ---- Batch tiling: split B evenly (bounded pad waste), keep >=2 grid steps
    # when the batch allows so v7x's two TensorCores both get work.
    n_tiles = pl.cdiv(B, tile_b)
    if n_tiles < 2 and B >= 32:
        n_tiles = 2
    tb = _round_up(pl.cdiv(B, n_tiles), 16)          # bf16 sublane multiple of 16
    grid_steps = pl.cdiv(B, tb)
    b_pad = grid_steps * tb

    xb = jnp.pad(x.astype(jnp.bfloat16),
                 ((0, b_pad - B), (0, in_pad - num_inputs)))

    const2 = lambda i: (0, 0)
    const3 = lambda i: (0, 0, 0)
    in_specs = [
        pl.BlockSpec((tb, in_pad), lambda i: (i, 0)),           # x: batch-tiled
        pl.BlockSpec((in_pad, hidden), const2),                 # weights pinned in VMEM
        pl.BlockSpec((5, 1, hidden), const3),
        pl.BlockSpec((4, hidden, hidden), const3),
        pl.BlockSpec((hidden, 2 * hidden), const2),
        pl.BlockSpec((1, 2 * hidden), const2),
        pl.BlockSpec((2 * hidden, out_w), const2),
        pl.BlockSpec((1, out_w), const2),
    ]
    out_spec = pl.BlockSpec((tb, out_w), lambda i: (i, 0))

    out = pl.pallas_call(
        functools.partial(_mhdqn_kernel, num_actions=num_actions),
        out_shape=jax.ShapeDtypeStruct((b_pad, out_w), jnp.bfloat16),
        grid=(grid_steps,),
        in_specs=in_specs,
        out_specs=out_spec,
        compiler_params=pltpu.CompilerParams(
            # megacore sharding of the batch axis on v7x; no-op on v5e/v6e
            dimension_semantics=("parallel",),
            # headroom for tb=2048 tiles; actual use is ~12 MiB, well under all chips
            vmem_limit_bytes=48 * 1024 * 1024),
    )(xb, packed["w1"], packed["btr"], packed["w25"],
      packed["wva1"], packed["bva1"], packed["wva2"], packed["bva2"])

    return out[:B, :num_actions].astype(jnp.float32)


# --------------------------------------------------------------------------- reference
def _reference_forward(params, x, head_index):
    """Pure-JAX reference matching kernel matmul precision (bf16 in, f32 accum)."""
    def lin(h, wb):
        w, b = wb
        return jnp.dot(h.astype(jnp.bfloat16), w.astype(jnp.bfloat16),
                       preferred_element_type=jnp.float32) + b

    h = x
    for wb in params["trunk"]:
        h = jax.nn.relu(lin(h, wb))
    head = params["heads"][head_index]
    v = jax.nn.relu(lin(h, head["v1"]))
    v = lin(v, head["v2"])
    a = jax.nn.relu(lin(h, head["a1"]))
    a = lin(a, head["a2"])
    return v + a - jnp.mean(a, axis=1, keepdims=True)


if __name__ == "__main__":
    num_inputs = 16
    num_actions = 4
    num_head = 3
    batch = 8

    key = jax.random.PRNGKey(0)
    pkey, xkey = jax.random.split(key)
    params = init_mhdqn_params(pkey, num_inputs, num_actions, num_head)
    x = jax.random.normal(xkey, (batch, num_inputs), jnp.float32)

    head_index = 1
    packed = pack_mhdqn_params(params, head_index)   # one-time, outside the hot path
    out = mhdqn_forward(packed, x, num_actions=num_actions)
    out = jax.block_until_ready(out)

    ref = _reference_forward(params, x, head_index)
    assert out.shape == (batch, num_actions)
    max_err = float(jnp.max(jnp.abs(out - ref)))
    # bf16 output store + bf16-packed adv-sum column add ~2^-9 relative rounding
    # on top of the bf16-matmul reference; 5e-3 covers it comfortably here.
    assert jnp.allclose(out, ref, atol=5e-3, rtol=5e-3), max_err

    print("KERNEL_OK")
</pallas_src>

<mosaic_0001>
module attributes {stable_mosaic.version = 11 : i64} {
  func.func @_mhdqn_kernel(%arg0: i32, %arg1: memref<16x128xbf16, #tpu.memory_space<vmem>>, %arg2: memref<128x256xbf16, #tpu.memory_space<vmem>>, %arg3: memref<5x1x256xf32, #tpu.memory_space<vmem>>, %arg4: memref<4x256x256xbf16, #tpu.memory_space<vmem>>, %arg5: memref<256x512xbf16, #tpu.memory_space<vmem>>, %arg6: memref<1x512xf32, #tpu.memory_space<vmem>>, %arg7: memref<512x128xbf16, #tpu.memory_space<vmem>>, %arg8: memref<1x128xf32, #tpu.memory_space<vmem>>, %arg9: memref<16x128xbf16, #tpu.memory_space<vmem>>) attributes {dimension_semantics = [#tpu.dimension_semantics<parallel>], iteration_bounds = array<i64: 1>, scalar_prefetch = 0 : i64, scratch_operands = 0 : i64, tpu.core_type = #tpu.core_type<tc>, window_params = [{transform_indices = @transform_0, window_bounds = array<i64: 16, 128>}, {pipeline_mode = #tpu.pipeline_mode<synchronous>, transform_indices = @transform_1, window_bounds = array<i64: 128, 256>}, {pipeline_mode = #tpu.pipeline_mode<synchronous>, transform_indices = @transform_2, window_bounds = array<i64: 5, 1, 256>}, {pipeline_mode = #tpu.pipeline_mode<synchronous>, transform_indices = @transform_3, window_bounds = array<i64: 4, 256, 256>}, {pipeline_mode = #tpu.pipeline_mode<synchronous>, transform_indices = @transform_4, window_bounds = array<i64: 256, 512>}, {pipeline_mode = #tpu.pipeline_mode<synchronous>, transform_indices = @transform_5, window_bounds = array<i64: 1, 512>}, {pipeline_mode = #tpu.pipeline_mode<synchronous>, transform_indices = @transform_6, window_bounds = array<i64: 512, 128>}, {pipeline_mode = #tpu.pipeline_mode<synchronous>, transform_indices = @transform_7, window_bounds = array<i64: 1, 128>}, {transform_indices = @transform_8, window_bounds = array<i64: 16, 128>}]} {
    %c0 = arith.constant 0 : index
    %c0_0 = arith.constant 0 : index
    %0 = vector.load %arg1[%c0, %c0_0] : memref<16x128xbf16, #tpu.memory_space<vmem>>, vector<16x128xbf16>
    %c0_1 = arith.constant 0 : index
    %c0_2 = arith.constant 0 : index
    %1 = vector.load %arg2[%c0_1, %c0_2] : memref<128x256xbf16, #tpu.memory_space<vmem>>, vector<128x256xbf16>
    %cst = arith.constant dense<0.000000e+00> : vector<16x256xf32>
    %2 = tpu.matmul %0, %1, %cst {dimension_numbers = #tpu.dot_dimension_numbers<[1], [0], [0], [1], [0, 0, 1, 1], [], []>} : vector<16x128xbf16>, vector<128x256xbf16>, vector<16x256xf32> -> vector<16x256xf32>
    %c0_3 = arith.constant 0 : index
    %c0_4 = arith.constant 0 : index
    %c0_5 = arith.constant 0 : index
    %3 = vector.load %arg3[%c0_3, %c0_4, %c0_5] : memref<5x1x256xf32, #tpu.memory_space<vmem>>, vector<1x1x256xf32>
    %4 = vector.shape_cast %3 : vector<1x1x256xf32> to vector<1x256xf32>
    %5 = vector.broadcast %4 : vector<1x256xf32> to vector<16x256xf32>
    %6 = arith.addf %2, %5 : vector<16x256xf32>
    %cst_6 = arith.constant 0.000000e+00 : f32
    %7 = vector.broadcast %cst_6 : f32 to vector<16x256xf32>
    %8 = arith.maximumf %6, %7 : vector<16x256xf32>
    %9 = arith.truncf %8 : vector<16x256xf32> to vector<16x256xbf16>
    %c0_7 = arith.constant 0 : index
    %c0_8 = arith.constant 0 : index
    %c0_9 = arith.constant 0 : index
    %10 = vector.load %arg4[%c0_7, %c0_8, %c0_9] : memref<4x256x256xbf16, #tpu.memory_space<vmem>>, vector<1x256x256xbf16>
    %11 = vector.shape_cast %10 : vector<1x256x256xbf16> to vector<256x256xbf16>
    %cst_10 = arith.constant dense<0.000000e+00> : vector<16x256xf32>
    %12 = tpu.matmul %9, %11, %cst_10 {dimension_numbers = #tpu.dot_dimension_numbers<[1], [0], [0], [1], [0, 0, 1, 1], [], []>} : vector<16x256xbf16>, vector<256x256xbf16>, vector<16x256xf32> -> vector<16x256xf32>
    %c1 = arith.constant 1 : index
    %c0_11 = arith.constant 0 : index
    %c0_12 = arith.constant 0 : index
    %13 = vector.load %arg3[%c1, %c0_11, %c0_12] : memref<5x1x256xf32, #tpu.memory_space<vmem>>, vector<1x1x256xf32>
    %14 = vector.shape_cast %13 : vector<1x1x256xf32> to vector<1x256xf32>
    %15 = vector.broadcast %14 : vector<1x256xf32> to vector<16x256xf32>
    %16 = arith.addf %12, %15 : vector<16x256xf32>
    %cst_13 = arith.constant 0.000000e+00 : f32
    %17 = vector.broadcast %cst_13 : f32 to vector<16x256xf32>
    %18 = arith.maximumf %16, %17 : vector<16x256xf32>
    %19 = arith.truncf %18 : vector<16x256xf32> to vector<16x256xbf16>
    %c1_14 = arith.constant 1 : index
    %c0_15 = arith.constant 0 : index
    %c0_16 = arith.constant 0 : index
    %20 = vector.load %arg4[%c1_14, %c0_15, %c0_16] : memref<4x256x256xbf16, #tpu.memory_space<vmem>>, vector<1x256x256xbf16>
    %21 = vector.shape_cast %20 : vector<1x256x256xbf16> to vector<256x256xbf16>
    %cst_17 = arith.constant dense<0.000000e+00> : vector<16x256xf32>
    %22 = tpu.matmul %19, %21, %cst_17 {dimension_numbers = #tpu.dot_dimension_numbers<[1], [0], [0], [1], [0, 0, 1, 1], [], []>} : vector<16x256xbf16>, vector<256x256xbf16>, vector<16x256xf32> -> vector<16x256xf32>
    %c2 = arith.constant 2 : index
    %c0_18 = arith.constant 0 : index
    %c0_19 = arith.constant 0 : index
    %23 = vector.load %arg3[%c2, %c0_18, %c0_19] : memref<5x1x256xf32, #tpu.memory_space<vmem>>, vector<1x1x256xf32>
    %24 = vector.shape_cast %23 : vector<1x1x256xf32> to vector<1x256xf32>
    %25 = vector.broadcast %24 : vector<1x256xf32> to vector<16x256xf32>
    %26 = arith.addf %22, %25 : vector<16x256xf32>
    %cst_20 = arith.constant 0.000000e+00 : f32
    %27 = vector.broadcast %cst_20 : f32 to vector<16x256xf32>
    %28 = arith.maximumf %26, %27 : vector<16x256xf32>
    %29 = arith.truncf %28 : vector<16x256xf32> to vector<16x256xbf16>
    %c2_21 = arith.constant 2 : index
    %c0_22 = arith.constant 0 : index
    %c0_23 = arith.constant 0 : index
    %30 = vector.load %arg4[%c2_21, %c0_22, %c0_23] : memref<4x256x256xbf16, #tpu.memory_space<vmem>>, vector<1x256x256xbf16>
    %31 = vector.shape_cast %30 : vector<1x256x256xbf16> to vector<256x256xbf16>
    %cst_24 = arith.constant dense<0.000000e+00> : vector<16x256xf32>
    %32 = tpu.matmul %29, %31, %cst_24 {dimension_numbers = #tpu.dot_dimension_numbers<[1], [0], [0], [1], [0, 0, 1, 1], [], []>} : vector<16x256xbf16>, vector<256x256xbf16>, vector<16x256xf32> -> vector<16x256xf32>
    %c3 = arith.constant 3 : index
    %c0_25 = arith.constant 0 : index
    %c0_26 = arith.constant 0 : index
    %33 = vector.load %arg3[%c3, %c0_25, %c0_26] : memref<5x1x256xf32, #tpu.memory_space<vmem>>, vector<1x1x256xf32>
    %34 = vector.shape_cast %33 : vector<1x1x256xf32> to vector<1x256xf32>
    %35 = vector.broadcast %34 : vector<1x256xf32> to vector<16x256xf32>
    %36 = arith.addf %32, %35 : vector<16x256xf32>
    %cst_27 = arith.constant 0.000000e+00 : f32
    %37 = vector.broadcast %cst_27 : f32 to vector<16x256xf32>
    %38 = arith.maximumf %36, %37 : vector<16x256xf32>
    %39 = arith.truncf %38 : vector<16x256xf32> to vector<16x256xbf16>
    %c3_28 = arith.constant 3 : index
    %c0_29 = arith.constant 0 : index
    %c0_30 = arith.constant 0 : index
    %40 = vector.load %arg4[%c3_28, %c0_29, %c0_30] : memref<4x256x256xbf16, #tpu.memory_space<vmem>>, vector<1x256x256xbf16>
    %41 = vector.shape_cast %40 : vector<1x256x256xbf16> to vector<256x256xbf16>
    %cst_31 = arith.constant dense<0.000000e+00> : vector<16x256xf32>
    %42 = tpu.matmul %39, %41, %cst_31 {dimension_numbers = #tpu.dot_dimension_numbers<[1], [0], [0], [1], [0, 0, 1, 1], [], []>} : vector<16x256xbf16>, vector<256x256xbf16>, vector<16x256xf32> -> vector<16x256xf32>
    %c4 = arith.constant 4 : index
    %c0_32 = arith.constant 0 : index
    %c0_33 = arith.constant 0 : index
    %43 = vector.load %arg3[%c4, %c0_32, %c0_33] : memref<5x1x256xf32, #tpu.memory_space<vmem>>, vector<1x1x256xf32>
    %44 = vector.shape_cast %43 : vector<1x1x256xf32> to vector<1x256xf32>
    %45 = vector.broadcast %44 : vector<1x256xf32> to vector<16x256xf32>
    %46 = arith.addf %42, %45 : vector<16x256xf32>
    %cst_34 = arith.constant 0.000000e+00 : f32
    %47 = vector.broadcast %cst_34 : f32 to vector<16x256xf32>
    %48 = arith.maximumf %46, %47 : vector<16x256xf32>
    %49 = arith.truncf %48 : vector<16x256xf32> to vector<16x256xbf16>
    %c0_35 = arith.constant 0 : index
    %c0_36 = arith.constant 0 : index
    %50 = vector.load %arg5[%c0_35, %c0_36] : memref<256x512xbf16, #tpu.memory_space<vmem>>, vector<256x512xbf16>
    %cst_37 = arith.constant dense<0.000000e+00> : vector<16x512xf32>
    %51 = tpu.matmul %49, %50, %cst_37 {dimension_numbers = #tpu.dot_dimension_numbers<[1], [0], [0], [1], [0, 0, 1, 1], [], []>} : vector<16x256xbf16>, vector<256x512xbf16>, vector<16x512xf32> -> vector<16x512xf32>
    %c0_38 = arith.constant 0 : index
    %c0_39 = arith.constant 0 : index
    %52 = vector.load %arg6[%c0_38, %c0_39] : memref<1x512xf32, #tpu.memory_space<vmem>>, vector<1x512xf32>
    %53 = vector.broadcast %52 : vector<1x512xf32> to vector<16x512xf32>
    %54 = arith.addf %51, %53 : vector<16x512xf32>
    %cst_40 = arith.constant 0.000000e+00 : f32
    %55 = vector.broadcast %cst_40 : f32 to vector<16x512xf32>
    %56 = arith.maximumf %54, %55 : vector<16x512xf32>
    %57 = arith.truncf %56 : vector<16x512xf32> to vector<16x512xbf16>
    %c0_41 = arith.constant 0 : index
    %c0_42 = arith.constant 0 : index
    %58 = vector.load %arg7[%c0_41, %c0_42] : memref<512x128xbf16, #tpu.memory_space<vmem>>, vector<512x128xbf16>
    %cst_43 = arith.constant dense<0.000000e+00> : vector<16x128xf32>
    %59 = tpu.matmul %57, %58, %cst_43 {dimension_numbers = #tpu.dot_dimension_numbers<[1], [0], [0], [1], [0, 0, 1, 1], [], []>} : vector<16x512xbf16>, vector<512x128xbf16>, vector<16x128xf32> -> vector<16x128xf32>
    %c0_44 = arith.constant 0 : index
    %c0_45 = arith.constant 0 : index
    %60 = vector.load %arg8[%c0_44, %c0_45] : memref<1x128xf32, #tpu.memory_space<vmem>>, vector<1x128xf32>
    %61 = vector.broadcast %60 : vector<1x128xf32> to vector<16x128xf32>
    %62 = arith.addf %59, %61 : vector<16x128xf32>
    %63 = vector.extract_strided_slice %62 {offsets = [0, 4], sizes = [16, 1], strides = [1, 1]} : vector<16x128xf32> to vector<16x1xf32>
    %64 = vector.extract_strided_slice %62 {offsets = [0, 5], sizes = [16, 1], strides = [1, 1]} : vector<16x128xf32> to vector<16x1xf32>
    %cst_46 = arith.constant 2.500000e-01 : f32
    %65 = vector.broadcast %cst_46 : f32 to vector<16x1xf32>
    %66 = arith.mulf %64, %65 : vector<16x1xf32>
    %67 = vector.broadcast %63 : vector<16x1xf32> to vector<16x128xf32>
    %68 = arith.addf %62, %67 : vector<16x128xf32>
    %69 = vector.broadcast %66 : vector<16x1xf32> to vector<16x128xf32>
    %70 = arith.subf %68, %69 : vector<16x128xf32>
    %71 = arith.truncf %70 : vector<16x128xf32> to vector<16x128xbf16>
    %c0_47 = arith.constant 0 : index
    %c0_48 = arith.constant 0 : index
    %72 = vector.load %arg9[%c0_47, %c0_48] : memref<16x128xbf16, #tpu.memory_space<vmem>>, vector<16x128xbf16>
    tpu.vector_store %arg9[%c0_47, %c0_48], %71 {strides = array<i32>} : memref<16x128xbf16, #tpu.memory_space<vmem>>, vector<16x128xbf16>,
    return
  }
  func.func @transform_0(%arg0: i32) -> (i32, i32) {
    %c0_i32 = arith.constant 0 : i32
    %c0_i32_0 = arith.constant 0 : i32
    return %arg0, %c0_i32 : i32, i32
  }
  func.func @transform_1(%arg0: i32) -> (i32, i32) {
    %c0_i32 = arith.constant 0 : i32
    %c0_i32_0 = arith.constant 0 : i32
    %c0_i32_1 = arith.constant 0 : i32
    return %c0_i32, %c0_i32_0 : i32, i32
  }
  func.func @transform_2(%arg0: i32) -> (i32, i32, i32) {
    %c0_i32 = arith.constant 0 : i32
    %c0_i32_0 = arith.constant 0 : i32
    %c0_i32_1 = arith.constant 0 : i32
    %c0_i32_2 = arith.constant 0 : i32
    return %c0_i32, %c0_i32_0, %c0_i32_1 : i32, i32, i32
  }
  func.func @transform_3(%arg0: i32) -> (i32, i32, i32) {
    %c0_i32 = arith.constant 0 : i32
    %c0_i32_0 = arith.constant 0 : i32
    %c0_i32_1 = arith.constant 0 : i32
    %c0_i32_2 = arith.constant 0 : i32
    return %c0_i32, %c0_i32_0, %c0_i32_1 : i32, i32, i32
  }
  func.func @transform_4(%arg0: i32) -> (i32, i32) {
    %c0_i32 = arith.constant 0 : i32
    %c0_i32_0 = arith.constant 0 : i32
    %c0_i32_1 = arith.constant 0 : i32
    return %c0_i32, %c0_i32_0 : i32, i32
  }
  func.func @transform_5(%arg0: i32) -> (i32, i32) {
    %c0_i32 = arith.constant 0 : i32
    %c0_i32_0 = arith.constant 0 : i32
    %c0_i32_1 = arith.constant 0 : i32
    return %c0_i32, %c0_i32_0 : i32, i32
  }
  func.func @transform_6(%arg0: i32) -> (i32, i32) {
    %c0_i32 = arith.constant 0 : i32
    %c0_i32_0 = arith.constant 0 : i32
    %c0_i32_1 = arith.constant 0 : i32
    return %c0_i32, %c0_i32_0 : i32, i32
  }
  func.func @transform_7(%arg0: i32) -> (i32, i32) {
    %c0_i32 = arith.constant 0 : i32
    %c0_i32_0 = arith.constant 0 : i32
    %c0_i32_1 = arith.constant 0 : i32
    return %c0_i32, %c0_i32_0 : i32, i32
  }
  func.func @transform_8(%arg0: i32) -> (i32, i32) {
    %c0_i32 = arith.constant 0 : i32
    %c0_i32_0 = arith.constant 0 : i32
    return %arg0, %c0_i32 : i32, i32
  }
}

</mosaic_0001>

<llo_original>
// kernel: mhdqn_forward.1
$region0: #{mhdqn_forward.1}
  #allocation0 [shape = 'u32[]', space=smem, size = 0x4, offset = 0x4, fixed_abs, tag = 'smem constant byte address 0x4 - core index']
  #allocation1 [shape = 'u32[72,128]{1,0:T(1,128)}', space=vmem, size = 0x9000, scoped, tag = 'internal scratch']
  %s0 = inlined_call_operand.vmem [shape: bf16[16,128], index: 0, kind: input, shape index: {}]
  %s1 = inlined_call_operand.hbm [shape: bf16[128,256], index: 1, kind: input, shape index: {}]
  %s2 = inlined_call_operand.vmem [shape: f32[5,1,256], index: 2, kind: input, shape index: {}]
  %s3 = inlined_call_operand.hbm [shape: bf16[4,256,256], index: 3, kind: input, shape index: {}]
  %s4 = inlined_call_operand.hbm [shape: bf16[256,512], index: 4, kind: input, shape index: {}]
  %s5 = inlined_call_operand.vmem [shape: f32[1,512], index: 5, kind: input, shape index: {}]
  %s6 = inlined_call_operand.hbm [shape: bf16[512,128], index: 6, kind: input, shape index: {}]
  %s7 = inlined_call_operand.vmem [shape: f32[1,128], index: 7, kind: input, shape index: {}]
  %s8 = inlined_call_operand.vmem [shape: bf16[16,128], index: 8, kind: output, shape index: {}]
  %s9 = sld [smem:[#allocation0]]
  $region58: #{mhdqn_forward.1} parent=0
    _
  %s11 = ssub.s32 1, %s9
  %s12 = scalar_select 0, %s11, %s9
  $region1: #{mhdqn_forward.1} parent=0
    #allocation2 [shape = 'u8[65536]{0}', space=vmem, size = 0x10000, scoped, tag = 'input window, operand 1, single buffered']
    #allocation3 [shape = 's32[1]{0}', space=sflag, size = 0x4, scoped, tag = 'scoped memory for mhdqn_forward.1']
    #allocation4 [shape = 'u8[524288]{0}', space=vmem, size = 0x80000, scoped, tag = 'input window, operand 3, single buffered']
    #allocation5 [shape = 's32[1]{0}', space=sflag, size = 0x4, scoped, tag = 'scoped memory for mhdqn_forward.1']
    #allocation6 [shape = 'u8[262144]{0}', space=vmem, size = 0x40000, scoped, tag = 'input window, operand 4, single buffered']
    #allocation7 [shape = 'u8[131072]{0}', space=vmem, size = 0x20000, scoped, tag = 'input window, operand 6, single buffered']
    #allocation8 [shape = 's32[1]{0}', space=sflag, size = 0x4, scoped, tag = 'scoped memory for mhdqn_forward.1']
    %13 = vsyncpa [#allocation3], 0
    %14 = vsyncpa [#allocation5], 0
    %15 = vsyncpa [#allocation8], 0
    // Predicated region
    $region2: #{mhdqn_forward.1} parent=1 // pred_check
      _
    $region3: #{mhdqn_forward.1} parent=1 // pred_check_branch
      %17 = sbr.rel (0) target = $region5
    $region4: #{mhdqn_forward.1} parent=1 // pred_region
      _
    $region5: #{mhdqn_forward.1} parent=1 // pred_fallthru
      _
    // Predicated region
    $region6: #{mhdqn_forward.1} parent=1 // pred_check
      _
    $region7: #{mhdqn_forward.1} parent=1 // pred_check_branch
      %19 = sbr.rel (0) target = $region9
    $region8: #{mhdqn_forward.1} parent=1 // pred_region
      %21 = vsyncadd [#allocation3], 0
      %s22 = sshll.u32 %s1, 4
      %s23 = int_to_ptr.hbm [resolvable:$true] %s22
      %s24 = sshll.u32 [#allocation2], 4
      %s25 = int_to_ptr.vmem [resolvable:$true] %s24
      %30 = dma.hbm_to_vmem [thread:$0]  %s23, 2048, %s25, [#allocation3], 128, 128, 8
    $region9: #{mhdqn_forward.1} parent=1 // pred_fallthru
      _
    // Predicated region
    $region10: #{mhdqn_forward.1} parent=1 // pred_check
      _
    $region11: #{mhdqn_forward.1} parent=1 // pred_check_branch
      %32 = sbr.rel (0) target = $region13
    $region12: #{mhdqn_forward.1} parent=1 // pred_region
      _
    $region13: #{mhdqn_forward.1} parent=1 // pred_fallthru
      _
    // Predicated region
    $region14: #{mhdqn_forward.1} parent=1 // pred_check
      _
    $region15: #{mhdqn_forward.1} parent=1 // pred_check_branch
      %34 = sbr.rel (0) target = $region17
    $region16: #{mhdqn_forward.1} parent=1 // pred_region
      %36 = vsyncadd [#allocation5], 0
      %s37 = sshll.u32 %s3, 4
      %s38 = int_to_ptr.hbm [resolvable:$true] %s37
      %s39 = sshll.u32 [#allocation4], 4
      %s40 = int_to_ptr.vmem [resolvable:$true] %s39
      %45 = dma.hbm_to_vmem [thread:$0]  %s38, 16384, %s40, [#allocation5], 128, 128, 8
    $region17: #{mhdqn_forward.1} parent=1 // pred_fallthru
      _
    // Predicated region
    $region18: #{mhdqn_forward.1} parent=1 // pred_check
      _
    $region19: #{mhdqn_forward.1} parent=1 // pred_check_branch
      %47 = sbr.rel (0) target = $region21
    $region20: #{mhdqn_forward.1} parent=1 // pred_region
      %49 = vsyncadd [#allocation5], 0
      %s50 = sshll.u32 %s4, 4
      %s51 = int_to_ptr.hbm [resolvable:$true] %s50
      %s52 = sshll.u32 [#allocation6], 4
      %s53 = int_to_ptr.vmem [resolvable:$true] %s52
      %58 = dma.hbm_to_vmem [thread:$0]  %s51, 8192, %s53, [#allocation5], 256, 256, 16
    $region21: #{mhdqn_forward.1} parent=1 // pred_fallthru
      _
    // Predicated region
    $region22: #{mhdqn_forward.1} parent=1 // pred_check
      _
    $region23: #{mhdqn_forward.1} parent=1 // pred_check_branch
      %60 = sbr.rel (0) target = $region25
    $region24: #{mhdqn_forward.1} parent=1 // pred_region
      _
    $region25: #{mhdqn_forward.1} parent=1 // pred_fallthru
      _
    // Predicated region
    $region26: #{mhdqn_forward.1} parent=1 // pred_check
      _
    $region27: #{mhdqn_forward.1} parent=1 // pred_check_branch
      %62 = sbr.rel (0) target = $region29
    $region28: #{mhdqn_forward.1} parent=1 // pred_region
      %64 = vsyncadd [#allocation8], 0
      %s65 = sshll.u32 %s6, 4
      %s66 = int_to_ptr.hbm [resolvable:$true] %s65
      %s67 = sshll.u32 [#allocation7], 4
      %s68 = int_to_ptr.vmem [resolvable:$true] %s67
      %73 = dma.hbm_to_vmem [thread:$0]  %s66, 4096, %s68, [#allocation8], 64, 64, 4
    $region29: #{mhdqn_forward.1} parent=1 // pred_fallthru
      _
    // Predicated region
    $region30: #{mhdqn_forward.1} parent=1 // pred_check
      _
    $region31: #{mhdqn_forward.1} parent=1 // pred_check_branch
      %75 = sbr.rel (0) target = $region33
    $region32: #{mhdqn_forward.1} parent=1 // pred_region
      _
    $region33: #{mhdqn_forward.1} parent=1 // pred_fallthru
      _
    // Predicated region
    $region34: #{mhdqn_forward.1} parent=1 // pred_check
      _
    $region35: #{mhdqn_forward.1} parent=1 // pred_check_branch
      %77 = sbr.rel (0) target = $region37
    $region36: #{mhdqn_forward.1} parent=1 // pred_region
      %79 = dma.done [#allocation3], 2048
    $region37: #{mhdqn_forward.1} parent=1 // pred_fallthru
      _
    // Predicated region
    $region38: #{mhdqn_forward.1} parent=1 // pred_check
      _
    $region39: #{mhdqn_forward.1} parent=1 // pred_check_branch
      %81 = sbr.rel (0) target = $region41
    $region40: #{mhdqn_forward.1} parent=1 // pred_region
      %83 = dma.done [#allocation5], 16384
    $region41: #{mhdqn_forward.1} parent=1 // pred_fallthru
      _
    // Predicated region
    $region42: #{mhdqn_forward.1} parent=1 // pred_check
      _
    $region43: #{mhdqn_forward.1} parent=1 // pred_check_branch
      %85 = sbr.rel (0) target = $region45
    $region44: #{mhdqn_forward.1} parent=1 // pred_region
      %87 = dma.done [#allocation5], 8192
    $region45: #{mhdqn_forward.1} parent=1 // pred_fallthru
      _
    // Predicated region
    $region46: #{mhdqn_forward.1} parent=1 // pred_check
      _
    $region47: #{mhdqn_forward.1} parent=1 // pred_check_branch
      %89 = sbr.rel (0) target = $region49
    $region48: #{mhdqn_forward.1} parent=1 // pred_region
      %91 = dma.done [#allocation8], 4096
    $region49: #{mhdqn_forward.1} parent=1 // pred_fallthru
      _
    %v92 = vld [vmem:[%s0] sm:$0xf]
    %v93 = vld [vmem:[%s0 + $0x4] sm:$0xf]
    %v94 = vld [vmem:[#allocation2] sm:$0xff]
    %v95 = vld [vmem:[#allocation2 + $0x8] sm:$0xff]
    %v96 = vld [vmem:[#allocation2 + $0x10] sm:$0xff]
    %v97 = vld [vmem:[#allocation2 + $0x18] sm:$0xff]
    %v98 = vld [vmem:[#allocation2 + $0x20] sm:$0xff]
    %v99 = vld [vmem:[#allocation2 + $0x28] sm:$0xff]
    %v100 = vld [vmem:[#allocation2 + $0x30] sm:$0xff]
    %v101 = vld [vmem:[#allocation2 + $0x38] sm:$0xff]
    %v102 = vld [vmem:[#allocation2 + $0x40] sm:$0xff]
    %v103 = vld [vmem:[#allocation2 + $0x48] sm:$0xff]
    %v104 = vld [vmem:[#allocation2 + $0x50] sm:$0xff]
    %v105 = vld [vmem:[#allocation2 + $0x58] sm:$0xff]
    %v106 = vld [vmem:[#allocation2 + $0x60] sm:$0xff]
    %v107 = vld [vmem:[#allocation2 + $0x68] sm:$0xff]
    %v108 = vld [vmem:[#allocation2 + $0x70] sm:$0xff]
    %v109 = vld [vmem:[#allocation2 + $0x78] sm:$0xff]
    %v110 = vld [vmem:[%s2] sm:$0x3]
    %v112 = vperm.slane %v110, 0
    %v113 = vperm.slane %v110, 1
    %v118 = vunpack.c.l.b16 %v92
    %v119 = vunpack.c.l.b16 %v93
    %v120 = vpack.c.b16 %v119, %v118
    %v138 = vunpack.c.l.b16 %v94
    %v139 = vunpack.c.h.b16 %v94
    %v140 = vunpack.c.l.b16 %v95
    %v141 = vunpack.c.h.b16 %v95
    %v142 = vunpack.c.l.b16 %v96
    %v143 = vunpack.c.h.b16 %v96
    %v144 = vunpack.c.l.b16 %v97
    %v145 = vunpack.c.h.b16 %v97
    %v146 = vunpack.c.l.b16 %v98
    %v147 = vunpack.c.h.b16 %v98
    %v148 = vunpack.c.l.b16 %v99
    %v149 = vunpack.c.h.b16 %v99
    %v150 = vunpack.c.l.b16 %v100
    %v151 = vunpack.c.h.b16 %v100
    %v152 = vunpack.c.l.b16 %v101
    %v153 = vunpack.c.h.b16 %v101
    %v154 = vunpack.c.l.b16 %v102
    %v155 = vunpack.c.h.b16 %v102
    %v156 = vunpack.c.l.b16 %v103
    %v157 = vunpack.c.h.b16 %v103
    %v158 = vunpack.c.l.b16 %v104
    %v159 = vunpack.c.h.b16 %v104
    %v160 = vunpack.c.l.b16 %v105
    %v161 = vunpack.c.h.b16 %v105
    %v162 = vunpack.c.l.b16 %v106
    %v163 = vunpack.c.h.b16 %v106
    %v164 = vunpack.c.l.b16 %v107
    %v165 = vunpack.c.h.b16 %v107
    %v166 = vunpack.c.l.b16 %v108
    %v167 = vunpack.c.h.b16 %v108
    %v168 = vunpack.c.l.b16 %v109
    %v169 = vunpack.c.h.b16 %v109
    %v170 = vpack.c.b16 %v140, %v138
    %v171 = vpack.c.b16 %v141, %v139
    %v172 = vpack.c.b16 %v144, %v142
    %v173 = vpack.c.b16 %v145, %v143
    %v174 = vpack.c.b16 %v148, %v146
    %v175 = vpack.c.b16 %v149, %v147
    %v176 = vpack.c.b16 %v152, %v150
    %v177 = vpack.c.b16 %v153, %v151
    %v178 = vpack.c.b16 %v156, %v154
    %v179 = vpack.c.b16 %v157, %v155
    %v180 = vpack.c.b16 %v160, %v158
    %v181 = vpack.c.b16 %v161, %v159
    %v182 = vpack.c.b16 %v164, %v162
    %v183 = vpack.c.b16 %v165, %v163
    %v184 = vpack.c.b16 %v168, %v166
    %v185 = vpack.c.b16 %v169, %v167
    %202 = vmatpush.bf16.msra.mxu0 %v184
    %203 = vmatpush.bf16.msra.mxu0 %v182
    %204 = vmatpush.bf16.msra.mxu0 %v180
    %205 = vmatpush.bf16.msra.mxu0 %v178
    %206 = vmatpush.bf16.msra.mxu0 %v176
    %207 = vmatpush.bf16.msra.mxu0 %v174
    %208 = vmatpush.bf16.msra.mxu0 %v172
    %209 = vmatpush.bf16.msra.mxu0 %v170
    %210 = vmatmul.bf16.gmra.mxu0 %v120
    %v211 = vpop.f32.mrf.mxu0
    %v212 = vadd.f32 %v112, %v211
    %v213 = vpop.f32.mrf.mxu0
    %v214 = vadd.f32 %v112, %v213
    %215 = vdwg.mxu0
    %216 = vmatpush.bf16.msra.mxu0 %v185
    %217 = vmatpush.bf16.msra.mxu0 %v183
    %218 = vmatpush.bf16.msra.mxu0 %v181
    %219 = vmatpush.bf16.msra.mxu0 %v179
    %220 = vmatpush.bf16.msra.mxu0 %v177
    %221 = vmatpush.bf16.msra.mxu0 %v175
    %222 = vmatpush.bf16.msra.mxu0 %v173
    %223 = vmatpush.bf16.msra.mxu0 %v171
    %224 = vmatmul.bf16.gmra.mxu0 %v120
    %v225 = vpop.f32.mrf.mxu0
    %v226 = vadd.f32 %v113, %v225
    %v227 = vpop.f32.mrf.mxu0
    %v228 = vadd.f32 %v113, %v227
    %229 = vdwg.mxu0
    %v230 = vmax.f32 %v212, 0.0
    %v231 = vmax.f32 %v226, 0.0
    %v232 = vmax.f32 %v214, 0.0
    %v233 = vmax.f32 %v228, 0.0
    %v234 = vpack.c.bf16 %v232, %v230
    %v235 = vpack.c.bf16 %v233, %v231
    %v236 = vld [vmem:[#allocation4] sm:$0xff]
    %v237 = vld [vmem:[#allocation4 + $0x8] sm:$0xff]
    %v238 = vld [vmem:[#allocation4 + $0x10] sm:$0xff]
    %v239 = vld [vmem:[#allocation4 + $0x18] sm:$0xff]
    %v240 = vld [vmem:[#allocation4 + $0x20] sm:$0xff]
    %v241 = vld [vmem:[#allocation4 + $0x28] sm:$0xff]
    %v242 = vld [vmem:[#allocation4 + $0x30] sm:$0xff]
    %v243 = vld [vmem:[#allocation4 + $0x38] sm:$0xff]
    %v244 = vld [vmem:[#allocation4 + $0x40] sm:$0xff]
    %v245 = vld [vmem:[#allocation4 + $0x48] sm:$0xff]
    %v246 = vld [vmem:[#allocation4 + $0x50] sm:$0xff]
    %v247 = vld [vmem:[#allocation4 + $0x58] sm:$0xff]
    %v248 = vld [vmem:[#allocation4 + $0x60] sm:$0xff]
    %v249 = vld [vmem:[#allocation4 + $0x68] sm:$0xff]
    %v250 = vld [vmem:[#allocation4 + $0x70] sm:$0xff]
    %v251 = vld [vmem:[#allocation4 + $0x78] sm:$0xff]
    %v252 = vld [vmem:[#allocation4 + $0x80] sm:$0xff]
    %v253 = vld [vmem:[#allocation4 + $0x88] sm:$0xff]
    %v254 = vld [vmem:[#allocation4 + $0x90] sm:$0xff]
    %v255 = vld [vmem:[#allocation4 + $0x98] sm:$0xff]
    %v256 = vld [vmem:[#allocation4 + $0xa0] sm:$0xff]
    %v257 = vld [vmem:[#allocation4 + $0xa8] sm:$0xff]
    %v258 = vld [vmem:[#allocation4 + $0xb0] sm:$0xff]
    %v259 = vld [vmem:[#allocation4 + $0xb8] sm:$0xff]
    %v260 = vld [vmem:[#allocation4 + $0xc0] sm:$0xff]
    %v261 = vld [vmem:[#allocation4 + $0xc8] sm:$0xff]
    %v262 = vld [vmem:[#allocation4 + $0xd0] sm:$0xff]
    %v263 = vld [vmem:[#allocation4 + $0xd8] sm:$0xff]
    %v264 = vld [vmem:[#allocation4 + $0xe0] sm:$0xff]
    %v265 = vld [vmem:[#allocation4 + $0xe8] sm:$0xff]
    %v266 = vld [vmem:[#allocation4 + $0xf0] sm:$0xff]
    %v267 = vld [vmem:[#allocation4 + $0xf8] sm:$0xff]
    %s268 = scalar_lea.vmem %s2, 2
    %v269 = vld [vmem:[%s268] sm:$0x3]
    %v271 = vperm.slane %v269, 0
    %v272 = vperm.slane %v269, 1
    %v307 = vunpack.c.l.b16 %v236
    %v308 = vunpack.c.h.b16 %v236
    %v309 = vunpack.c.l.b16 %v237
    %v310 = vunpack.c.h.b16 %v237
    %v311 = vunpack.c.l.b16 %v238
    %v312 = vunpack.c.h.b16 %v238
    %v313 = vunpack.c.l.b16 %v239
    %v314 = vunpack.c.h.b16 %v239
    %v315 = vunpack.c.l.b16 %v240
    %v316 = vunpack.c.h.b16 %v240
    %v317 = vunpack.c.l.b16 %v241
    %v318 = vunpack.c.h.b16 %v241
    %v319 = vunpack.c.l.b16 %v242
    %v320 = vunpack.c.h.b16 %v242
    %v321 = vunpack.c.l.b16 %v243
    %v322 = vunpack.c.h.b16 %v243
    %v323 = vunpack.c.l.b16 %v244
    %v324 = vunpack.c.h.b16 %v244
    %v325 = vunpack.c.l.b16 %v245
    %v326 = vunpack.c.h.b16 %v245
    %v327 = vunpack.c.l.b16 %v246
    %v328 = vunpack.c.h.b16 %v246
    %v329 = vunpack.c.l.b16 %v247
    %v330 = vunpack.c.h.b16 %v247
    %v331 = vunpack.c.l.b16 %v248
    %v332 = vunpack.c.h.b16 %v248
    %v333 = vunpack.c.l.b16 %v249
    %v334 = vunpack.c.h.b16 %v249
    %v335 = vunpack.c.l.b16 %v250
    %v336 = vunpack.c.h.b16 %v250
    %v337 = vunpack.c.l.b16 %v251
    %v338 = vunpack.c.h.b16 %v251
    %v339 = vunpack.c.l.b16 %v252
    %v340 = vunpack.c.h.b16 %v252
    %v341 = vunpack.c.l.b16 %v253
    %v342 = vunpack.c.h.b16 %v253
    %v343 = vunpack.c.l.b16 %v254
    %v344 = vunpack.c.h.b16 %v254
    %v345 = vunpack.c.l.b16 %v255
    %v346 = vunpack.c.h.b16 %v255
    %v347 = vunpack.c.l.b16 %v256
    %v348 = vunpack.c.h.b16 %v256
    %v349 = vunpack.c.l.b16 %v257
    %v350 = vunpack.c.h.b16 %v257
    %v351 = vunpack.c.l.b16 %v258
    %v352 = vunpack.c.h.b16 %v258
    %v353 = vunpack.c.l.b16 %v259
    %v354 = vunpack.c.h.b16 %v259
    %v355 = vunpack.c.l.b16 %v260
    %v356 = vunpack.c.h.b16 %v260
    %v357 = vunpack.c.l.b16 %v261
    %v358 = vunpack.c.h.b16 %v261
    %v359 = vunpack.c.l.b16 %v262
    %v360 = vunpack.c.h.b16 %v262
    %v361 = vunpack.c.l.b16 %v263
    %v362 = vunpack.c.h.b16 %v263
    %v363 = vunpack.c.l.b16 %v264
    %v364 = vunpack.c.h.b16 %v264
    %v365 = vunpack.c.l.b16 %v265
    %v366 = vunpack.c.h.b16 %v265
    %v367 = vunpack.c.l.b16 %v266
    %v368 = vunpack.c.h.b16 %v266
    %v369 = vunpack.c.l.b16 %v267
    %v370 = vunpack.c.h.b16 %v267
    %v371 = vpack.c.b16 %v309, %v307
    %v372 = vpack.c.b16 %v310, %v308
    %v373 = vpack.c.b16 %v313, %v311
    %v374 = vpack.c.b16 %v314, %v312
    %v375 = vpack.c.b16 %v317, %v315
    %v376 = vpack.c.b16 %v318, %v316
    %v377 = vpack.c.b16 %v321, %v319
    %v378 = vpack.c.b16 %v322, %v320
    %v379 = vpack.c.b16 %v325, %v323
    %v380 = vpack.c.b16 %v326, %v324
    %v381 = vpack.c.b16 %v329, %v327
    %v382 = vpack.c.b16 %v330, %v328
    %v383 = vpack.c.b16 %v333, %v331
    %v384 = vpack.c.b16 %v334, %v332
    %v385 = vpack.c.b16 %v337, %v335
    %v386 = vpack.c.b16 %v338, %v336
    %v387 = vpack.c.b16 %v341, %v339
    %v388 = vpack.c.b16 %v342, %v340
    %v389 = vpack.c.b16 %v345, %v343
    %v390 = vpack.c.b16 %v346, %v344
    %v391 = vpack.c.b16 %v349, %v347
    %v392 = vpack.c.b16 %v350, %v348
    %v393 = vpack.c.b16 %v353, %v351
    %v394 = vpack.c.b16 %v354, %v352
    %v395 = vpack.c.b16 %v357, %v355
    %v396 = vpack.c.b16 %v358, %v356
    %v397 = vpack.c.b16 %v361, %v359
    %v398 = vpack.c.b16 %v362, %v360
    %v399 = vpack.c.b16 %v365, %v363
    %v400 = vpack.c.b16 %v366, %v364
    %v401 = vpack.c.b16 %v369, %v367
    %v402 = vpack.c.b16 %v370, %v368
    %435 = vmatpush.bf16.msra.mxu0 %v385
    %436 = vmatpush.bf16.msra.mxu0 %v383
    %437 = vmatpush.bf16.msra.mxu0 %v381
    %438 = vmatpush.bf16.msra.mxu0 %v379
    %439 = vmatpush.bf16.msra.mxu0 %v377
    %440 = vmatpush.bf16.msra.mxu0 %v375
    %441 = vmatpush.bf16.msra.mxu0 %v373
    %442 = vmatpush.bf16.msra.mxu0 %v371
    %443 = vmatmul.bf16.gmra.mxu0 %v234
    %v444 = vpop.f32.mrf.mxu0
    %v445 = vadd.f32 %v271, %v444
    %v446 = vpop.f32.mrf.mxu0
    %v447 = vadd.f32 %v271, %v446
    %448 = vdwg.mxu0
    %449 = vmatpush.bf16.msra.mxu0 %v401
    %450 = vmatpush.bf16.msra.mxu0 %v399
    %451 = vmatpush.bf16.msra.mxu0 %v397
    %452 = vmatpush.bf16.msra.mxu0 %v395
    %453 = vmatpush.bf16.msra.mxu0 %v393
    %454 = vmatpush.bf16.msra.mxu0 %v391
    %455 = vmatpush.bf16.msra.mxu0 %v389
    %456 = vmatpush.bf16.msra.mxu0 %v387
    %457 = vmatmul.bf16.gmra.mxu0 %v235
    %v458 = vpop.f32.mrf.mxu0
    %v459 = vadd.f32 %v445, %v458
    %v460 = vpop.f32.mrf.mxu0
    %v461 = vadd.f32 %v447, %v460
    %462 = vdwg.mxu0
    %463 = vmatpush.bf16.msra.mxu0 %v386
    %464 = vmatpush.bf16.msra.mxu0 %v384
    %465 = vmatpush.bf16.msra.mxu0 %v382
    %466 = vmatpush.bf16.msra.mxu0 %v380
    %467 = vmatpush.bf16.msra.mxu0 %v378
    %468 = vmatpush.bf16.msra.mxu0 %v376
    %469 = vmatpush.bf16.msra.mxu0 %v374
    %470 = vmatpush.bf16.msra.mxu0 %v372
    %471 = vmatmul.bf16.gmra.mxu0 %v234
    %v472 = vpop.f32.mrf.mxu0
    %v473 = vadd.f32 %v272, %v472
    %v474 = vpop.f32.mrf.mxu0
    %v475 = vadd.f32 %v272, %v474
    %476 = vdwg.mxu0
    %477 = vmatpush.bf16.msra.mxu0 %v402
    %478 = vmatpush.bf16.msra.mxu0 %v400
    %479 = vmatpush.bf16.msra.mxu0 %v398
    %480 = vmatpush.bf16.msra.mxu0 %v396
    %481 = vmatpush.bf16.msra.mxu0 %v394
    %482 = vmatpush.bf16.msra.mxu0 %v392
    %483 = vmatpush.bf16.msra.mxu0 %v390
    %484 = vmatpush.bf16.msra.mxu0 %v388
    %485 = vmatmul.bf16.gmra.mxu0 %v235
    %v486 = vpop.f32.mrf.mxu0
    %v487 = vadd.f32 %v473, %v486
    %v488 = vpop.f32.mrf.mxu0
    %v489 = vadd.f32 %v475, %v488
    %490 = vdwg.mxu0
    %v491 = vmax.f32 %v459, 0.0
    %v492 = vmax.f32 %v487, 0.0
    %v493 = vmax.f32 %v461, 0.0
    %v494 = vmax.f32 %v489, 0.0
    %v495 = vpack.c.bf16 %v493, %v491
    %v496 = vpack.c.bf16 %v494, %v492
    %s497 = scalar_lea.vmem [#allocation4], 256
    %v498 = vld [vmem:[%s497] sm:$0xff]
    %v499 = vld [vmem:[%s497 + $0x8] sm:$0xff]
    %v500 = vld [vmem:[%s497 + $0x10] sm:$0xff]
    %v501 = vld [vmem:[%s497 + $0x18] sm:$0xff]
    %v502 = vld [vmem:[%s497 + $0x20] sm:$0xff]
    %v503 = vld [vmem:[%s497 + $0x28] sm:$0xff]
    %v504 = vld [vmem:[%s497 + $0x30] sm:$0xff]
    %v505 = vld [vmem:[%s497 + $0x38] sm:$0xff]
    %v506 = vld [vmem:[%s497 + $0x40] sm:$0xff]
    %v507 = vld [vmem:[%s497 + $0x48] sm:$0xff]
    %v508 = vld [vmem:[%s497 + $0x50] sm:$0xff]
    %v509 = vld [vmem:[%s497 + $0x58] sm:$0xff]
    %v510 = vld [vmem:[%s497 + $0x60] sm:$0xff]
    %v511 = vld [vmem:[%s497 + $0x68] sm:$0xff]
    %v512 = vld [vmem:[%s497 + $0x70] sm:$0xff]
    %v513 = vld [vmem:[%s497 + $0x78] sm:$0xff]
    %v514 = vld [vmem:[%s497 + $0x80] sm:$0xff]
    %v515 = vld [vmem:[%s497 + $0x88] sm:$0xff]
    %v516 = vld [vmem:[%s497 + $0x90] sm:$0xff]
    %v517 = vld [vmem:[%s497 + $0x98] sm:$0xff]
    %v518 = vld [vmem:[%s497 + $0xa0] sm:$0xff]
    %v519 = vld [vmem:[%s497 + $0xa8] sm:$0xff]
    %v520 = vld [vmem:[%s497 + $0xb0] sm:$0xff]
    %v521 = vld [vmem:[%s497 + $0xb8] sm:$0xff]
    %v522 = vld [vmem:[%s497 + $0xc0] sm:$0xff]
    %v523 = vld [vmem:[%s497 + $0xc8] sm:$0xff]
    %v524 = vld [vmem:[%s497 + $0xd0] sm:$0xff]
    %v525 = vld [vmem:[%s497 + $0xd8] sm:$0xff]
    %v526 = vld [vmem:[%s497 + $0xe0] sm:$0xff]
    %v527 = vld [vmem:[%s497 + $0xe8] sm:$0xff]
    %v528 = vld [vmem:[%s497 + $0xf0] sm:$0xff]
    %v529 = vld [vmem:[%s497 + $0xf8] sm:$0xff]
    %s530 = scalar_lea.vmem %s2, 4
    %v531 = vld [vmem:[%s530] sm:$0x3]
    %v533 = vperm.slane %v531, 0
    %v534 = vperm.slane %v531, 1
    %v569 = vunpack.c.l.b16 %v498
    %v570 = vunpack.c.h.b16 %v498
    %v571 = vunpack.c.l.b16 %v499
    %v572 = vunpack.c.h.b16 %v499
    %v573 = vunpack.c.l.b16 %v500
    %v574 = vunpack.c.h.b16 %v500
    %v575 = vunpack.c.l.b16 %v501
    %v576 = vunpack.c.h.b16 %v501
    %v577 = vunpack.c.l.b16 %v502
    %v578 = vunpack.c.h.b16 %v502
    %v579 = vunpack.c.l.b16 %v503
    %v580 = vunpack.c.h.b16 %v503
    %v581 = vunpack.c.l.b16 %v504
    %v582 = vunpack.c.h.b16 %v504
    %v583 = vunpack.c.l.b16 %v505
    %v584 = vunpack.c.h.b16 %v505
    %v585 = vunpack.c.l.b16 %v506
    %v586 = vunpack.c.h.b16 %v506
    %v587 = vunpack.c.l.b16 %v507
    %v588 = vunpack.c.h.b16 %v507
    %v589 = vunpack.c.l.b16 %v508
    %v590 = vunpack.c.h.b16 %v508
    %v591 = vunpack.c.l.b16 %v509
    %v592 = vunpack.c.h.b16 %v509
    %v593 = vunpack.c.l.b16 %v510
    %v594 = vunpack.c.h.b16 %v510
    %v595 = vunpack.c.l.b16 %v511
    %v596 = vunpack.c.h.b16 %v511
    %v597 = vunpack.c.l.b16 %v512
    %v598 = vunpack.c.h.b16 %v512
    %v599 = vunpack.c.l.b16 %v513
    %v600 = vunpack.c.h.b16 %v513
    %v601 = vunpack.c.l.b16 %v514
    %v602 = vunpack.c.h.b16 %v514
    %v603 = vunpack.c.l.b16 %v515
    %v604 = vunpack.c.h.b16 %v515
    %v605 = vunpack.c.l.b16 %v516
    %v606 = vunpack.c.h.b16 %v516
    %v607 = vunpack.c.l.b16 %v517
    %v608 = vunpack.c.h.b16 %v517
    %v609 = vunpack.c.l.b16 %v518
    %v610 = vunpack.c.h.b16 %v518
    %v611 = vunpack.c.l.b16 %v519
    %v612 = vunpack.c.h.b16 %v519
    %v613 = vunpack.c.l.b16 %v520
    %v614 = vunpack.c.h.b16 %v520
    %v615 = vunpack.c.l.b16 %v521
    %v616 = vunpack.c.h.b16 %v521
    %v617 = vunpack.c.l.b16 %v522
    %v618 = vunpack.c.h.b16 %v522
    %v619 = vunpack.c.l.b16 %v523
    %v620 = vunpack.c.h.b16 %v523
    %v621 = vunpack.c.l.b16 %v524
    %v622 = vunpack.c.h.b16 %v524
    %v623 = vunpack.c.l.b16 %v525
    %v624 = vunpack.c.h.b16 %v525
    %v625 = vunpack.c.l.b16 %v526
    %v626 = vunpack.c.h.b16 %v526
    %v627 = vunpack.c.l.b16 %v527
    %v628 = vunpack.c.h.b16 %v527
    %v629 = vunpack.c.l.b16 %v528
    %v630 = vunpack.c.h.b16 %v528
    %v631 = vunpack.c.l.b16 %v529
    %v632 = vunpack.c.h.b16 %v529
    %v633 = vpack.c.b16 %v571, %v569
    %v634 = vpack.c.b16 %v572, %v570
    %v635 = vpack.c.b16 %v575, %v573
    %v636 = vpack.c.b16 %v576, %v574
    %v637 = vpack.c.b16 %v579, %v577
    %v638 = vpack.c.b16 %v580, %v578
    %v639 = vpack.c.b16 %v583, %v581
    %v640 = vpack.c.b16 %v584, %v582
    %v641 = vpack.c.b16 %v587, %v585
    %v642 = vpack.c.b16 %v588, %v586
    %v643 = vpack.c.b16 %v591, %v589
    %v644 = vpack.c.b16 %v592, %v590
    %v645 = vpack.c.b16 %v595, %v593
    %v646 = vpack.c.b16 %v596, %v594
    %v647 = vpack.c.b16 %v599, %v597
    %v648 = vpack.c.b16 %v600, %v598
    %v649 = vpack.c.b16 %v603, %v601
    %v650 = vpack.c.b16 %v604, %v602
    %v651 = vpack.c.b16 %v607, %v605
    %v652 = vpack.c.b16 %v608, %v606
    %v653 = vpack.c.b16 %v611, %v609
    %v654 = vpack.c.b16 %v612, %v610
    %v655 = vpack.c.b16 %v615, %v613
    %v656 = vpack.c.b16 %v616, %v614
    %v657 = vpack.c.b16 %v619, %v617
    %v658 = vpack.c.b16 %v620, %v618
    %v659 = vpack.c.b16 %v623, %v621
    %v660 = vpack.c.b16 %v624, %v622
    %v661 = vpack.c.b16 %v627, %v625
    %v662 = vpack.c.b16 %v628, %v626
    %v663 = vpack.c.b16 %v631, %v629
    %v664 = vpack.c.b16 %v632, %v630
    %697 = vmatpush.bf16.msra.mxu0 %v647
    %698 = vmatpush.bf16.msra.mxu0 %v645
    %699 = vmatpush.bf16.msra.mxu0 %v643
    %700 = vmatpush.bf16.msra.mxu0 %v641
    %701 = vmatpush.bf16.msra.mxu0 %v639
    %702 = vmatpush.bf16.msra.mxu0 %v637
    %703 = vmatpush.bf16.msra.mxu0 %v635
    %704 = vmatpush.bf16.msra.mxu0 %v633
    %705 = vmatmul.bf16.gmra.mxu0 %v495
    %v706 = vpop.f32.mrf.mxu0
    %v707 = vadd.f32 %v533, %v706
    %v708 = vpop.f32.mrf.mxu0
    %v709 = vadd.f32 %v533, %v708
    %710 = vdwg.mxu0
    %711 = vmatpush.bf16.msra.mxu0 %v663
    %712 = vmatpush.bf16.msra.mxu0 %v661
    %713 = vmatpush.bf16.msra.mxu0 %v659
    %714 = vmatpush.bf16.msra.mxu0 %v657
    %715 = vmatpush.bf16.msra.mxu0 %v655
    %716 = vmatpush.bf16.msra.mxu0 %v653
    %717 = vmatpush.bf16.msra.mxu0 %v651
    %718 = vmatpush.bf16.msra.mxu0 %v649
    %719 = vmatmul.bf16.gmra.mxu0 %v496
    %v720 = vpop.f32.mrf.mxu0
    %v721 = vadd.f32 %v707, %v720
    %v722 = vpop.f32.mrf.mxu0
    %v723 = vadd.f32 %v709, %v722
    %724 = vdwg.mxu0
    %725 = vmatpush.bf16.msra.mxu0 %v648
    %726 = vmatpush.bf16.msra.mxu0 %v646
    %727 = vmatpush.bf16.msra.mxu0 %v644
    %728 = vmatpush.bf16.msra.mxu0 %v642
    %729 = vmatpush.bf16.msra.mxu0 %v640
    %730 = vmatpush.bf16.msra.mxu0 %v638
    %731 = vmatpush.bf16.msra.mxu0 %v636
    %732 = vmatpush.bf16.msra.mxu0 %v634
    %733 = vmatmul.bf16.gmra.mxu0 %v495
    %v734 = vpop.f32.mrf.mxu0
    %v735 = vadd.f32 %v534, %v734
    %v736 = vpop.f32.mrf.mxu0
    %v737 = vadd.f32 %v534, %v736
    %738 = vdwg.mxu0
    %739 = vmatpush.bf16.msra.mxu0 %v664
    %740 = vmatpush.bf16.msra.mxu0 %v662
    %741 = vmatpush.bf16.msra.mxu0 %v660
    %742 = vmatpush.bf16.msra.mxu0 %v658
    %743 = vmatpush.bf16.msra.mxu0 %v656
    %744 = vmatpush.bf16.msra.mxu0 %v654
    %745 = vmatpush.bf16.msra.mxu0 %v652
    %746 = vmatpush.bf16.msra.mxu0 %v650
    %747 = vmatmul.bf16.gmra.mxu0 %v496
    %v748 = vpop.f32.mrf.mxu0
    %v749 = vadd.f32 %v735, %v748
    %v750 = vpop.f32.mrf.mxu0
    %v751 = vadd.f32 %v737, %v750
    %752 = vdwg.mxu0
    %v753 = vmax.f32 %v721, 0.0
    %v754 = vmax.f32 %v749, 0.0
    %v755 = vmax.f32 %v723, 0.0
    %v756 = vmax.f32 %v751, 0.0
    %v757 = vpack.c.bf16 %v755, %v753
    %v758 = vpack.c.bf16 %v756, %v754
    %s759 = scalar_lea.vmem [#allocation4], 512
    %v760 = vld [vmem:[%s759] sm:$0xff]
    %v761 = vld [vmem:[%s759 + $0x8] sm:$0xff]
    %v762 = vld [vmem:[%s759 + $0x10] sm:$0xff]
    %v763 = vld [vmem:[%s759 + $0x18] sm:$0xff]
    %v764 = vld [vmem:[%s759 + $0x20] sm:$0xff]
    %v765 = vld [vmem:[%s759 + $0x28] sm:$0xff]
    %v766 = vld [vmem:[%s759 + $0x30] sm:$0xff]
    %v767 = vld [vmem:[%s759 + $0x38] sm:$0xff]
    %v768 = vld [vmem:[%s759 + $0x40] sm:$0xff]
    %v769 = vld [vmem:[%s759 + $0x48] sm:$0xff]
    %v770 = vld [vmem:[%s759 + $0x50] sm:$0xff]
    %v771 = vld [vmem:[%s759 + $0x58] sm:$0xff]
    %v772 = vld [vmem:[%s759 + $0x60] sm:$0xff]
    %v773 = vld [vmem:[%s759 + $0x68] sm:$0xff]
    %v774 = vld [vmem:[%s759 + $0x70] sm:$0xff]
    %v775 = vld [vmem:[%s759 + $0x78] sm:$0xff]
    %v776 = vld [vmem:[%s759 + $0x80] sm:$0xff]
    %v777 = vld [vmem:[%s759 + $0x88] sm:$0xff]
    %v778 = vld [vmem:[%s759 + $0x90] sm:$0xff]
    %v779 = vld [vmem:[%s759 + $0x98] sm:$0xff]
    %v780 = vld [vmem:[%s759 + $0xa0] sm:$0xff]
    %v781 = vld [vmem:[%s759 + $0xa8] sm:$0xff]
    %v782 = vld [vmem:[%s759 + $0xb0] sm:$0xff]
    %v783 = vld [vmem:[%s759 + $0xb8] sm:$0xff]
    %v784 = vld [vmem:[%s759 + $0xc0] sm:$0xff]
    %v785 = vld [vmem:[%s759 + $0xc8] sm:$0xff]
    %v786 = vld [vmem:[%s759 + $0xd0] sm:$0xff]
    %v787 = vld [vmem:[%s759 + $0xd8] sm:$0xff]
    %v788 = vld [vmem:[%s759 + $0xe0] sm:$0xff]
    %v789 = vld [vmem:[%s759 + $0xe8] sm:$0xff]
    %v790 = vld [vmem:[%s759 + $0xf0] sm:$0xff]
    %v791 = vld [vmem:[%s759 + $0xf8] sm:$0xff]
    %s792 = scalar_lea.vmem %s2, 6
    %v793 = vld [vmem:[%s792] sm:$0x3]
    %v795 = vperm.slane %v793, 0
    %v796 = vperm.slane %v793, 1
    %v831 = vunpack.c.l.b16 %v760
    %v832 = vunpack.c.h.b16 %v760
    %v833 = vunpack.c.l.b16 %v761
    %v834 = vunpack.c.h.b16 %v761
    %v835 = vunpack.c.l.b16 %v762
    %v836 = vunpack.c.h.b16 %v762
    %v837 = vunpack.c.l.b16 %v763
    %v838 = vunpack.c.h.b16 %v763
    %v839 = vunpack.c.l.b16 %v764
    %v840 = vunpack.c.h.b16 %v764
    %v841 = vunpack.c.l.b16 %v765
    %v842 = vunpack.c.h.b16 %v765
    %v843 = vunpack.c.l.b16 %v766
    %v844 = vunpack.c.h.b16 %v766
    %v845 = vunpack.c.l.b16 %v767
    %v846 = vunpack.c.h.b16 %v767
    %v847 = vunpack.c.l.b16 %v768
    %v848 = vunpack.c.h.b16 %v768
    %v849 = vunpack.c.l.b16 %v769
    %v850 = vunpack.c.h.b16 %v769
    %v851 = vunpack.c.l.b16 %v770
    %v852 = vunpack.c.h.b16 %v770
    %v853 = vunpack.c.l.b16 %v771
    %v854 = vunpack.c.h.b16 %v771
    %v855 = vunpack.c.l.b16 %v772
    %v856 = vunpack.c.h.b16 %v772
    %v857 = vunpack.c.l.b16 %v773
    %v858 = vunpack.c.h.b16 %v773
    %v859 = vunpack.c.l.b16 %v774
    %v860 = vunpack.c.h.b16 %v774
    %v861 = vunpack.c.l.b16 %v775
    %v862 = vunpack.c.h.b16 %v775
    %v863 = vunpack.c.l.b16 %v776
    %v864 = vunpack.c.h.b16 %v776
    %v865 = vunpack.c.l.b16 %v777
    %v866 = vunpack.c.h.b16 %v777
    %v867 = vunpack.c.l.b16 %v778
    %v868 = vunpack.c.h.b16 %v778
    %v869 = vunpack.c.l.b16 %v779
    %v870 = vunpack.c.h.b16 %v779
    %v871 = vunpack.c.l.b16 %v780
    %v872 = vunpack.c.h.b16 %v780
    %v873 = vunpack.c.l.b16 %v781
    %v874 = vunpack.c.h.b16 %v781
    %v875 = vunpack.c.l.b16 %v782
    %v876 = vunpack.c.h.b16 %v782
    %v877 = vunpack.c.l.b16 %v783
    %v878 = vunpack.c.h.b16 %v783
    %v879 = vunpack.c.l.b16 %v784
    %v880 = vunpack.c.h.b16 %v784
    %v881 = vunpack.c.l.b16 %v785
    %v882 = vunpack.c.h.b16 %v785
    %v883 = vunpack.c.l.b16 %v786
    %v884 = vunpack.c.h.b16 %v786
    %v885 = vunpack.c.l.b16 %v787
    %v886 = vunpack.c.h.b16 %v787
    %v887 = vunpack.c.l.b16 %v788
    %v888 = vunpack.c.h.b16 %v788
    %v889 = vunpack.c.l.b16 %v789
    %v890 = vunpack.c.h.b16 %v789
    %v891 = vunpack.c.l.b16 %v790
    %v892 = vunpack.c.h.b16 %v790
    %v893 = vunpack.c.l.b16 %v791
    %v894 = vunpack.c.h.b16 %v791
    %v895 = vpack.c.b16 %v833, %v831
    %v896 = vpack.c.b16 %v834, %v832
    %v897 = vpack.c.b16 %v837, %v835
    %v898 = vpack.c.b16 %v838, %v836
    %v899 = vpack.c.b16 %v841, %v839
    %v900 = vpack.c.b16 %v842, %v840
    %v901 = vpack.c.b16 %v845, %v843
    %v902 = vpack.c.b16 %v846, %v844
    %v903 = vpack.c.b16 %v849, %v847
    %v904 = vpack.c.b16 %v850, %v848
    %v905 = vpack.c.b16 %v853, %v851
    %v906 = vpack.c.b16 %v854, %v852
    %v907 = vpack.c.b16 %v857, %v855
    %v908 = vpack.c.b16 %v858, %v856
    %v909 = vpack.c.b16 %v861, %v859
    %v910 = vpack.c.b16 %v862, %v860
    %v911 = vpack.c.b16 %v865, %v863
    %v912 = vpack.c.b16 %v866, %v864
    %v913 = vpack.c.b16 %v869, %v867
    %v914 = vpack.c.b16 %v870, %v868
    %v915 = vpack.c.b16 %v873, %v871
    %v916 = vpack.c.b16 %v874, %v872
    %v917 = vpack.c.b16 %v877, %v875
    %v918 = vpack.c.b16 %v878, %v876
    %v919 = vpack.c.b16 %v881, %v879
    %v920 = vpack.c.b16 %v882, %v880
    %v921 = vpack.c.b16 %v885, %v883
    %v922 = vpack.c.b16 %v886, %v884
    %v923 = vpack.c.b16 %v889, %v887
    %v924 = vpack.c.b16 %v890, %v888
    %v925 = vpack.c.b16 %v893, %v891
    %v926 = vpack.c.b16 %v894, %v892
    %959 = vmatpush.bf16.msra.mxu0 %v909
    %960 = vmatpush.bf16.msra.mxu0 %v907
    %961 = vmatpush.bf16.msra.mxu0 %v905
    %962 = vmatpush.bf16.msra.mxu0 %v903
    %963 = vmatpush.bf16.msra.mxu0 %v901
    %964 = vmatpush.bf16.msra.mxu0 %v899
    %965 = vmatpush.bf16.msra.mxu0 %v897
    %966 = vmatpush.bf16.msra.mxu0 %v895
    %967 = vmatmul.bf16.gmra.mxu0 %v757
    %v968 = vpop.f32.mrf.mxu0
    %v969 = vadd.f32 %v795, %v968
    %v970 = vpop.f32.mrf.mxu0
    %v971 = vadd.f32 %v795, %v970
    %972 = vdwg.mxu0
    %973 = vmatpush.bf16.msra.mxu0 %v925
    %974 = vmatpush.bf16.msra.mxu0 %v923
    %975 = vmatpush.bf16.msra.mxu0 %v921
    %976 = vmatpush.bf16.msra.mxu0 %v919
    %977 = vmatpush.bf16.msra.mxu0 %v917
    %978 = vmatpush.bf16.msra.mxu0 %v915
    %979 = vmatpush.bf16.msra.mxu0 %v913
    %980 = vmatpush.bf16.msra.mxu0 %v911
    %981 = vmatmul.bf16.gmra.mxu0 %v758
    %v982 = vpop.f32.mrf.mxu0
    %v983 = vadd.f32 %v969, %v982
    %v984 = vpop.f32.mrf.mxu0
    %v985 = vadd.f32 %v971, %v984
    %986 = vdwg.mxu0
    %987 = vmatpush.bf16.msra.mxu0 %v910
    %988 = vmatpush.bf16.msra.mxu0 %v908
    %989 = vmatpush.bf16.msra.mxu0 %v906
    %990 = vmatpush.bf16.msra.mxu0 %v904
    %991 = vmatpush.bf16.msra.mxu0 %v902
    %992 = vmatpush.bf16.msra.mxu0 %v900
    %993 = vmatpush.bf16.msra.mxu0 %v898
    %994 = vmatpush.bf16.msra.mxu0 %v896
    %995 = vmatmul.bf16.gmra.mxu0 %v757
    %v996 = vpop.f32.mrf.mxu0
    %v997 = vadd.f32 %v796, %v996
    %v998 = vpop.f32.mrf.mxu0
    %v999 = vadd.f32 %v796, %v998
    %1000 = vdwg.mxu0
    %1001 = vmatpush.bf16.msra.mxu0 %v926
    %1002 = vmatpush.bf16.msra.mxu0 %v924
    %1003 = vmatpush.bf16.msra.mxu0 %v922
    %1004 = vmatpush.bf16.msra.mxu0 %v920
    %1005 = vmatpush.bf16.msra.mxu0 %v918
    %1006 = vmatpush.bf16.msra.mxu0 %v916
    %1007 = vmatpush.bf16.msra.mxu0 %v914
    %1008 = vmatpush.bf16.msra.mxu0 %v912
    %1009 = vmatmul.bf16.gmra.mxu0 %v758
    %v1010 = vpop.f32.mrf.mxu0
    %v1011 = vadd.f32 %v997, %v1010
    %v1012 = vpop.f32.mrf.mxu0
    %v1013 = vadd.f32 %v999, %v1012
    %1014 = vdwg.mxu0
    %v1015 = vmax.f32 %v983, 0.0
    %v1016 = vmax.f32 %v1011, 0.0
    %v1017 = vmax.f32 %v985, 0.0
    %v1018 = vmax.f32 %v1013, 0.0
    %v1019 = vpack.c.bf16 %v1017, %v1015
    %v1020 = vpack.c.bf16 %v1018, %v1016
    %s1021 = scalar_lea.vmem [#allocation4], 768
    %v1022 = vld [vmem:[%s1021] sm:$0xff]
    %v1023 = vld [vmem:[%s1021 + $0x8] sm:$0xff]
    %v1024 = vld [vmem:[%s1021 + $0x10] sm:$0xff]
    %v1025 = vld [vmem:[%s1021 + $0x18] sm:$0xff]
    %v1026 = vld [vmem:[%s1021 + $0x20] sm:$0xff]
    %v1027 = vld [vmem:[%s1021 + $0x28] sm:$0xff]
    %v1028 = vld [vmem:[%s1021 + $0x30] sm:$0xff]
    %v1029 = vld [vmem:[%s1021 + $0x38] sm:$0xff]
    %v1030 = vld [vmem:[%s1021 + $0x40] sm:$0xff]
    %v1031 = vld [vmem:[%s1021 + $0x48] sm:$0xff]
    %v1032 = vld [vmem:[%s1021 + $0x50] sm:$0xff]
    %v1033 = vld [vmem:[%s1021 + $0x58] sm:$0xff]
    %v1034 = vld [vmem:[%s1021 + $0x60] sm:$0xff]
    %v1035 = vld [vmem:[%s1021 + $0x68] sm:$0xff]
    %v1036 = vld [vmem:[%s1021 + $0x70] sm:$0xff]
    %v1037 = vld [vmem:[%s1021 + $0x78] sm:$0xff]
    %v1038 = vld [vmem:[%s1021 + $0x80] sm:$0xff]
    %v1039 = vld [vmem:[%s1021 + $0x88] sm:$0xff]
    %v1040 = vld [vmem:[%s1021 + $0x90] sm:$0xff]
    %v1041 = vld [vmem:[%s1021 + $0x98] sm:$0xff]
    %v1042 = vld [vmem:[%s1021 + $0xa0] sm:$0xff]
    %v1043 = vld [vmem:[%s1021 + $0xa8] sm:$0xff]
    %v1044 = vld [vmem:[%s1021 + $0xb0] sm:$0xff]
    %v1045 = vld [vmem:[%s1021 + $0xb8] sm:$0xff]
    %v1046 = vld [vmem:[%s1021 + $0xc0] sm:$0xff]
    %v1047 = vld [vmem:[%s1021 + $0xc8] sm:$0xff]
    %v1048 = vld [vmem:[%s1021 + $0xd0] sm:$0xff]
    %v1049 = vld [vmem:[%s1021 + $0xd8] sm:$0xff]
    %v1050 = vld [vmem:[%s1021 + $0xe0] sm:$0xff]
    %v1051 = vld [vmem:[%s1021 + $0xe8] sm:$0xff]
    %v1052 = vld [vmem:[%s1021 + $0xf0] sm:$0xff]
    %v1053 = vld [vmem:[%s1021 + $0xf8] sm:$0xff]
    %s1054 = scalar_lea.vmem %s2, 8
    %v1055 = vld [vmem:[%s1054] sm:$0x3]
    %v1057 = vperm.slane %v1055, 0
    %v1058 = vperm.slane %v1055, 1
    %v1093 = vunpack.c.l.b16 %v1022
    %v1094 = vunpack.c.h.b16 %v1022
    %v1095 = vunpack.c.l.b16 %v1023
    %v1096 = vunpack.c.h.b16 %v1023
    %v1097 = vunpack.c.l.b16 %v1024
    %v1098 = vunpack.c.h.b16 %v1024
    %v1099 = vunpack.c.l.b16 %v1025
    %v1100 = vunpack.c.h.b16 %v1025
    %v1101 = vunpack.c.l.b16 %v1026
    %v1102 = vunpack.c.h.b16 %v1026
    %v1103 = vunpack.c.l.b16 %v1027
    %v1104 = vunpack.c.h.b16 %v1027
    %v1105 = vunpack.c.l.b16 %v1028
    %v1106 = vunpack.c.h.b16 %v1028
    %v1107 = vunpack.c.l.b16 %v1029
    %v1108 = vunpack.c.h.b16 %v1029
    %v1109 = vunpack.c.l.b16 %v1030
    %v1110 = vunpack.c.h.b16 %v1030
    %v1111 = vunpack.c.l.b16 %v1031
    %v1112 = vunpack.c.h.b16 %v1031
    %v1113 = vunpack.c.l.b16 %v1032
    %v1114 = vunpack.c.h.b16 %v1032
    %v1115 = vunpack.c.l.b16 %v1033
    %v1116 = vunpack.c.h.b16 %v1033
    %v1117 = vunpack.c.l.b16 %v1034
    %v1118 = vunpack.c.h.b16 %v1034
    %v1119 = vunpack.c.l.b16 %v1035
    %v1120 = vunpack.c.h.b16 %v1035
    %v1121 = vunpack.c.l.b16 %v1036
    %v1122 = vunpack.c.h.b16 %v1036
    %v1123 = vunpack.c.l.b16 %v1037
    %v1124 = vunpack.c.h.b16 %v1037
    %v1125 = vunpack.c.l.b16 %v1038
    %v1126 = vunpack.c.h.b16 %v1038
    %v1127 = vunpack.c.l.b16 %v1039
    %v1128 = vunpack.c.h.b16 %v1039
    %v1129 = vunpack.c.l.b16 %v1040
    %v1130 = vunpack.c.h.b16 %v1040
    %v1131 = vunpack.c.l.b16 %v1041
    %v1132 = vunpack.c.h.b16 %v1041
    %v1133 = vunpack.c.l.b16 %v1042
    %v1134 = vunpack.c.h.b16 %v1042
    %v1135 = vunpack.c.l.b16 %v1043
    %v1136 = vunpack.c.h.b16 %v1043
    %v1137 = vunpack.c.l.b16 %v1044
    %v1138 = vunpack.c.h.b16 %v1044
    %v1139 = vunpack.c.l.b16 %v1045
    %v1140 = vunpack.c.h.b16 %v1045
    %v1141 = vunpack.c.l.b16 %v1046
    %v1142 = vunpack.c.h.b16 %v1046
    %v1143 = vunpack.c.l.b16 %v1047
    %v1144 = vunpack.c.h.b16 %v1047
    %v1145 = vunpack.c.l.b16 %v1048
    %v1146 = vunpack.c.h.b16 %v1048
    %v1147 = vunpack.c.l.b16 %v1049
    %v1148 = vunpack.c.h.b16 %v1049
    %v1149 = vunpack.c.l.b16 %v1050
    %v1150 = vunpack.c.h.b16 %v1050
    %v1151 = vunpack.c.l.b16 %v1051
    %v1152 = vunpack.c.h.b16 %v1051
    %v1153 = vunpack.c.l.b16 %v1052
    %v1154 = vunpack.c.h.b16 %v1052
    %v1155 = vunpack.c.l.b16 %v1053
    %v1156 = vunpack.c.h.b16 %v1053
    %v1157 = vpack.c.b16 %v1095, %v1093
    %v1158 = vpack.c.b16 %v1096, %v1094
    %v1159 = vpack.c.b16 %v1099, %v1097
    %v1160 = vpack.c.b16 %v1100, %v1098
    %v1161 = vpack.c.b16 %v1103, %v1101
    %v1162 = vpack.c.b16 %v1104, %v1102
    %v1163 = vpack.c.b16 %v1107, %v1105
    %v1164 = vpack.c.b16 %v1108, %v1106
    %v1165 = vpack.c.b16 %v1111, %v1109
    %v1166 = vpack.c.b16 %v1112, %v1110
    %v1167 = vpack.c.b16 %v1115, %v1113
    %v1168 = vpack.c.b16 %v1116, %v1114
    %v1169 = vpack.c.b16 %v1119, %v1117
    %v1170 = vpack.c.b16 %v1120, %v1118
    %v1171 = vpack.c.b16 %v1123, %v1121
    %v1172 = vpack.c.b16 %v1124, %v1122
    %v1173 = vpack.c.b16 %v1127, %v1125
    %v1174 = vpack.c.b16 %v1128, %v1126
    %v1175 = vpack.c.b16 %v1131, %v1129
    %v1176 = vpack.c.b16 %v1132, %v1130
    %v1177 = vpack.c.b16 %v1135, %v1133
    %v1178 = vpack.c.b16 %v1136, %v1134
    %v1179 = vpack.c.b16 %v1139, %v1137
    %v1180 = vpack.c.b16 %v1140, %v1138
    %v1181 = vpack.c.b16 %v1143, %v1141
    %v1182 = vpack.c.b16 %v1144, %v1142
    %v1183 = vpack.c.b16 %v1147, %v1145
    %v1184 = vpack.c.b16 %v1148, %v1146
    %v1185 = vpack.c.b16 %v1151, %v1149
    %v1186 = vpack.c.b16 %v1152, %v1150
    %v1187 = vpack.c.b16 %v1155, %v1153
    %v1188 = vpack.c.b16 %v1156, %v1154
    %1221 = vmatpush.bf16.msra.mxu0 %v1171
    %1222 = vmatpush.bf16.msra.mxu0 %v1169
    %1223 = vmatpush.bf16.msra.mxu0 %v1167
    %1224 = vmatpush.bf16.msra.mxu0 %v1165
    %1225 = vmatpush.bf16.msra.mxu0 %v1163
    %1226 = vmatpush.bf16.msra.mxu0 %v1161
    %1227 = vmatpush.bf16.msra.mxu0 %v1159
    %1228 = vmatpush.bf16.msra.mxu0 %v1157
    %1229 = vmatmul.bf16.gmra.mxu0 %v1019
    %v1230 = vpop.f32.mrf.mxu0
    %v1231 = vadd.f32 %v1057, %v1230
    %v1232 = vpop.f32.mrf.mxu0
    %v1233 = vadd.f32 %v1057, %v1232
    %1234 = vdwg.mxu0
    %1235 = vmatpush.bf16.msra.mxu0 %v1187
    %1236 = vmatpush.bf16.msra.mxu0 %v1185
    %1237 = vmatpush.bf16.msra.mxu0 %v1183
    %1238 = vmatpush.bf16.msra.mxu0 %v1181
    %1239 = vmatpush.bf16.msra.mxu0 %v1179
    %1240 = vmatpush.bf16.msra.mxu0 %v1177
    %1241 = vmatpush.bf16.msra.mxu0 %v1175
    %1242 = vmatpush.bf16.msra.mxu0 %v1173
    %1243 = vmatmul.bf16.gmra.mxu0 %v1020
    %v1244 = vpop.f32.mrf.mxu0
    %v1245 = vadd.f32 %v1231, %v1244
    %v1246 = vpop.f32.mrf.mxu0
    %v1247 = vadd.f32 %v1233, %v1246
    %1248 = vdwg.mxu0
    %1249 = vmatpush.bf16.msra.mxu0 %v1172
    %1250 = vmatpush.bf16.msra.mxu0 %v1170
    %1251 = vmatpush.bf16.msra.mxu0 %v1168
    %1252 = vmatpush.bf16.msra.mxu0 %v1166
    %1253 = vmatpush.bf16.msra.mxu0 %v1164
    %1254 = vmatpush.bf16.msra.mxu0 %v1162
    %1255 = vmatpush.bf16.msra.mxu0 %v1160
    %1256 = vmatpush.bf16.msra.mxu0 %v1158
    %1257 = vmatmul.bf16.gmra.mxu0 %v1019
    %v1258 = vpop.f32.mrf.mxu0
    %v1259 = vadd.f32 %v1058, %v1258
    %v1260 = vpop.f32.mrf.mxu0
    %v1261 = vadd.f32 %v1058, %v1260
    %1262 = vdwg.mxu0
    %1263 = vmatpush.bf16.msra.mxu0 %v1188
    %1264 = vmatpush.bf16.msra.mxu0 %v1186
    %1265 = vmatpush.bf16.msra.mxu0 %v1184
    %1266 = vmatpush.bf16.msra.mxu0 %v1182
    %1267 = vmatpush.bf16.msra.mxu0 %v1180
    %1268 = vmatpush.bf16.msra.mxu0 %v1178
    %1269 = vmatpush.bf16.msra.mxu0 %v1176
    %1270 = vmatpush.bf16.msra.mxu0 %v1174
    %1271 = vmatmul.bf16.gmra.mxu0 %v1020
    %v1272 = vpop.f32.mrf.mxu0
    %v1273 = vadd.f32 %v1259, %v1272
    %v1274 = vpop.f32.mrf.mxu0
    %v1275 = vadd.f32 %v1261, %v1274
    %1276 = vdwg.mxu0
    %v1277 = vmax.f32 %v1245, 0.0
    %v1278 = vmax.f32 %v1273, 0.0
    %v1279 = vmax.f32 %v1247, 0.0
    %v1280 = vmax.f32 %v1275, 0.0
    %v1281 = vpack.c.bf16 %v1279, %v1277
    %v1282 = vpack.c.bf16 %v1280, %v1278
    %v1283 = vld [vmem:[#allocation6] sm:$0xff]
    %v1284 = vld [vmem:[#allocation6 + $0x8] sm:$0xff]
    %v1285 = vld [vmem:[#allocation6 + $0x10] sm:$0xff]
    %v1286 = vld [vmem:[#allocation6 + $0x18] sm:$0xff]
    %v1287 = vld [vmem:[#allocation6 + $0x20] sm:$0xff]
    %v1288 = vld [vmem:[#allocation6 + $0x28] sm:$0xff]
    %v1289 = vld [vmem:[#allocation6 + $0x30] sm:$0xff]
    %v1290 = vld [vmem:[#allocation6 + $0x38] sm:$0xff]
    %v1291 = vld [vmem:[#allocation6 + $0x40] sm:$0xff]
    %v1292 = vld [vmem:[#allocation6 + $0x48] sm:$0xff]
    %v1293 = vld [vmem:[#allocation6 + $0x50] sm:$0xff]
    %v1294 = vld [vmem:[#allocation6 + $0x58] sm:$0xff]
    %v1295 = vld [vmem:[#allocation6 + $0x60] sm:$0xff]
    %v1296 = vld [vmem:[#allocation6 + $0x68] sm:$0xff]
    %v1297 = vld [vmem:[#allocation6 + $0x70] sm:$0xff]
    %v1298 = vld [vmem:[#allocation6 + $0x78] sm:$0xff]
    %v1299 = vld [vmem:[#allocation6 + $0x80] sm:$0xff]
    %v1300 = vld [vmem:[#allocation6 + $0x88] sm:$0xff]
    %v1301 = vld [vmem:[#allocation6 + $0x90] sm:$0xff]
    %v1302 = vld [vmem:[#allocation6 + $0x98] sm:$0xff]
    %v1303 = vld [vmem:[#allocation6 + $0xa0] sm:$0xff]
    %v1304 = vld [vmem:[#allocation6 + $0xa8] sm:$0xff]
    %v1305 = vld [vmem:[#allocation6 + $0xb0] sm:$0xff]
    %v1306 = vld [vmem:[#allocation6 + $0xb8] sm:$0xff]
    %v1307 = vld [vmem:[#allocation6 + $0xc0] sm:$0xff]
    %v1308 = vld [vmem:[#allocation6 + $0xc8] sm:$0xff]
    %v1309 = vld [vmem:[#allocation6 + $0xd0] sm:$0xff]
    %v1310 = vld [vmem:[#allocation6 + $0xd8] sm:$0xff]
    %v1311 = vld [vmem:[#allocation6 + $0xe0] sm:$0xff]
    %v1312 = vld [vmem:[#allocation6 + $0xe8] sm:$0xff]
    %v1313 = vld [vmem:[#allocation6 + $0xf0] sm:$0xff]
    %v1314 = vld [vmem:[#allocation6 + $0xf8] sm:$0xff]
    %v1315 = vld [vmem:[#allocation6 + $0x100] sm:$0xff]
    %v1316 = vld [vmem:[#allocation6 + $0x108] sm:$0xff]
    %v1317 = vld [vmem:[#allocation6 + $0x110] sm:$0xff]
    %v1318 = vld [vmem:[#allocation6 + $0x118] sm:$0xff]
    %v1319 = vld [vmem:[#allocation6 + $0x120] sm:$0xff]
    %v1320 = vld [vmem:[#allocation6 + $0x128] sm:$0xff]
    %v1321 = vld [vmem:[#allocation6 + $0x130] sm:$0xff]
    %v1322 = vld [vmem:[#allocation6 + $0x138] sm:$0xff]
    %v1323 = vld [vmem:[#allocation6 + $0x140] sm:$0xff]
    %v1324 = vld [vmem:[#allocation6 + $0x148] sm:$0xff]
    %v1325 = vld [vmem:[#allocation6 + $0x150] sm:$0xff]
    %v1326 = vld [vmem:[#allocation6 + $0x158] sm:$0xff]
    %v1327 = vld [vmem:[#allocation6 + $0x160] sm:$0xff]
    %v1328 = vld [vmem:[#allocation6 + $0x168] sm:$0xff]
    %v1329 = vld [vmem:[#allocation6 + $0x170] sm:$0xff]
    %v1330 = vld [vmem:[#allocation6 + $0x178] sm:$0xff]
    %v1331 = vld [vmem:[#allocation6 + $0x180] sm:$0xff]
    %v1332 = vld [vmem:[#allocation6 + $0x188] sm:$0xff]
    %v1333 = vld [vmem:[#allocation6 + $0x190] sm:$0xff]
    %v1334 = vld [vmem:[#allocation6 + $0x198] sm:$0xff]
    %v1335 = vld [vmem:[#allocation6 + $0x1a0] sm:$0xff]
    %v1336 = vld [vmem:[#allocation6 + $0x1a8] sm:$0xff]
    %v1337 = vld [vmem:[#allocation6 + $0x1b0] sm:$0xff]
    %v1338 = vld [vmem:[#allocation6 + $0x1b8] sm:$0xff]
    %v1339 = vld [vmem:[#allocation6 + $0x1c0] sm:$0xff]
    %v1340 = vld [vmem:[#allocation6 + $0x1c8] sm:$0xff]
    %v1341 = vld [vmem:[#allocation6 + $0x1d0] sm:$0xff]
    %v1342 = vld [vmem:[#allocation6 + $0x1d8] sm:$0xff]
    %v1343 = vld [vmem:[#allocation6 + $0x1e0] sm:$0xff]
    %v1344 = vld [vmem:[#allocation6 + $0x1e8] sm:$0xff]
    %v1345 = vld [vmem:[#allocation6 + $0x1f0] sm:$0xff]
    %v1346 = vld [vmem:[#allocation6 + $0x1f8] sm:$0xff]
    %v1347 = vld [vmem:[%s5] sm:$0xf]
    %v1349 = vperm.slane %v1347, 0
    %v1350 = vperm.slane %v1347, 1
    %v1351 = vperm.slane %v1347, 2
    %v1352 = vperm.slane %v1347, 3
    %v1421 = vunpack.c.l.b16 %v1283
    %v1422 = vunpack.c.h.b16 %v1283
    %v1423 = vunpack.c.l.b16 %v1284
    %v1424 = vunpack.c.h.b16 %v1284
    %v1425 = vunpack.c.l.b16 %v1285
    %v1426 = vunpack.c.h.b16 %v1285
    %v1427 = vunpack.c.l.b16 %v1286
    %v1428 = vunpack.c.h.b16 %v1286
    %v1429 = vunpack.c.l.b16 %v1287
    %v1430 = vunpack.c.h.b16 %v1287
    %v1431 = vunpack.c.l.b16 %v1288
    %v1432 = vunpack.c.h.b16 %v1288
    %v1433 = vunpack.c.l.b16 %v1289
    %v1434 = vunpack.c.h.b16 %v1289
    %v1435 = vunpack.c.l.b16 %v1290
    %v1436 = vunpack.c.h.b16 %v1290
    %v1437 = vunpack.c.l.b16 %v1291
    %v1438 = vunpack.c.h.b16 %v1291
    %v1439 = vunpack.c.l.b16 %v1292
    %v1440 = vunpack.c.h.b16 %v1292
    %v1441 = vunpack.c.l.b16 %v1293
    %v1442 = vunpack.c.h.b16 %v1293
    %v1443 = vunpack.c.l.b16 %v1294
    %v1444 = vunpack.c.h.b16 %v1294
    %v1445 = vunpack.c.l.b16 %v1295
    %v1446 = vunpack.c.h.b16 %v1295
    %v1447 = vunpack.c.l.b16 %v1296
    %v1448 = vunpack.c.h.b16 %v1296
    %v1449 = vunpack.c.l.b16 %v1297
    %v1450 = vunpack.c.h.b16 %v1297
    %v1451 = vunpack.c.l.b16 %v1298
    %v1452 = vunpack.c.h.b16 %v1298
    %v1453 = vunpack.c.l.b16 %v1299
    %v1454 = vunpack.c.h.b16 %v1299
    %v1455 = vunpack.c.l.b16 %v1300
    %v1456 = vunpack.c.h.b16 %v1300
    %v1457 = vunpack.c.l.b16 %v1301
    %v1458 = vunpack.c.h.b16 %v1301
    %v1459 = vunpack.c.l.b16 %v1302
    %v1460 = vunpack.c.h.b16 %v1302
    %v1461 = vunpack.c.l.b16 %v1303
    %v1462 = vunpack.c.h.b16 %v1303
    %v1463 = vunpack.c.l.b16 %v1304
    %v1464 = vunpack.c.h.b16 %v1304
    %v1465 = vunpack.c.l.b16 %v1305
    %v1466 = vunpack.c.h.b16 %v1305
    %v1467 = vunpack.c.l.b16 %v1306
    %v1468 = vunpack.c.h.b16 %v1306
    %v1469 = vunpack.c.l.b16 %v1307
    %v1470 = vunpack.c.h.b16 %v1307
    %v1471 = vunpack.c.l.b16 %v1308
    %v1472 = vunpack.c.h.b16 %v1308
    %v1473 = vunpack.c.l.b16 %v1309
    %v1474 = vunpack.c.h.b16 %v1309
    %v1475 = vunpack.c.l.b16 %v1310
    %v1476 = vunpack.c.h.b16 %v1310
    %v1477 = vunpack.c.l.b16 %v1311
    %v1478 = vunpack.c.h.b16 %v1311
    %v1479 = vunpack.c.l.b16 %v1312
    %v1480 = vunpack.c.h.b16 %v1312
    %v1481 = vunpack.c.l.b16 %v1313
    %v1482 = vunpack.c.h.b16 %v1313
    %v1483 = vunpack.c.l.b16 %v1314
    %v1484 = vunpack.c.h.b16 %v1314
    %v1485 = vunpack.c.l.b16 %v1315
    %v1486 = vunpack.c.h.b16 %v1315
    %v1487 = vunpack.c.l.b16 %v1316
    %v1488 = vunpack.c.h.b16 %v1316
    %v1489 = vunpack.c.l.b16 %v1317
    %v1490 = vunpack.c.h.b16 %v1317
    %v1491 = vunpack.c.l.b16 %v1318
    %v1492 = vunpack.c.h.b16 %v1318
    %v1493 = vunpack.c.l.b16 %v1319
    %v1494 = vunpack.c.h.b16 %v1319
    %v1495 = vunpack.c.l.b16 %v1320
    %v1496 = vunpack.c.h.b16 %v1320
    %v1497 = vunpack.c.l.b16 %v1321
    %v1498 = vunpack.c.h.b16 %v1321
    %v1499 = vunpack.c.l.b16 %v1322
    %v1500 = vunpack.c.h.b16 %v1322
    %v1501 = vunpack.c.l.b16 %v1323
    %v1502 = vunpack.c.h.b16 %v1323
    %v1503 = vunpack.c.l.b16 %v1324
    %v1504 = vunpack.c.h.b16 %v1324
    %v1505 = vunpack.c.l.b16 %v1325
    %v1506 = vunpack.c.h.b16 %v1325
    %v1507 = vunpack.c.l.b16 %v1326
    %v1508 = vunpack.c.h.b16 %v1326
    %v1509 = vunpack.c.l.b16 %v1327
    %v1510 = vunpack.c.h.b16 %v1327
    %v1511 = vunpack.c.l.b16 %v1328
    %v1512 = vunpack.c.h.b16 %v1328
    %v1513 = vunpack.c.l.b16 %v1329
    %v1514 = vunpack.c.h.b16 %v1329
    %v1515 = vunpack.c.l.b16 %v1330
    %v1516 = vunpack.c.h.b16 %v1330
    %v1517 = vunpack.c.l.b16 %v1331
    %v1518 = vunpack.c.h.b16 %v1331
    %v1519 = vunpack.c.l.b16 %v1332
    %v1520 = vunpack.c.h.b16 %v1332
    %v1521 = vunpack.c.l.b16 %v1333
    %v1522 = vunpack.c.h.b16 %v1333
    %v1523 = vunpack.c.l.b16 %v1334
    %v1524 = vunpack.c.h.b16 %v1334
    %v1525 = vunpack.c.l.b16 %v1335
    %v1526 = vunpack.c.h.b16 %v1335
    %v1527 = vunpack.c.l.b16 %v1336
    %v1528 = vunpack.c.h.b16 %v1336
    %v1529 = vunpack.c.l.b16 %v1337
    %v1530 = vunpack.c.h.b16 %v1337
    %v1531 = vunpack.c.l.b16 %v1338
    %v1532 = vunpack.c.h.b16 %v1338
    %v1533 = vunpack.c.l.b16 %v1339
    %v1534 = vunpack.c.h.b16 %v1339
    %v1535 = vunpack.c.l.b16 %v1340
    %v1536 = vunpack.c.h.b16 %v1340
    %v1537 = vunpack.c.l.b16 %v1341
    %v1538 = vunpack.c.h.b16 %v1341
    %v1539 = vunpack.c.l.b16 %v1342
    %v1540 = vunpack.c.h.b16 %v1342
    %v1541 = vunpack.c.l.b16 %v1343
    %v1542 = vunpack.c.h.b16 %v1343
    %v1543 = vunpack.c.l.b16 %v1344
    %v1544 = vunpack.c.h.b16 %v1344
    %v1545 = vunpack.c.l.b16 %v1345
    %v1546 = vunpack.c.h.b16 %v1345
    %v1547 = vunpack.c.l.b16 %v1346
    %v1548 = vunpack.c.h.b16 %v1346
    %v1549 = vpack.c.b16 %v1425, %v1421
    %v1550 = vpack.c.b16 %v1426, %v1422
    %v1551 = vpack.c.b16 %v1427, %v1423
    %v1552 = vpack.c.b16 %v1428, %v1424
    %v1553 = vpack.c.b16 %v1433, %v1429
    %v1554 = vpack.c.b16 %v1434, %v1430
    %v1555 = vpack.c.b16 %v1435, %v1431
    %v1556 = vpack.c.b16 %v1436, %v1432
    %v1557 = vpack.c.b16 %v1441, %v1437
    %v1558 = vpack.c.b16 %v1442, %v1438
    %v1559 = vpack.c.b16 %v1443, %v1439
    %v1560 = vpack.c.b16 %v1444, %v1440
    %v1561 = vpack.c.b16 %v1449, %v1445
    %v1562 = vpack.c.b16 %v1450, %v1446
    %v1563 = vpack.c.b16 %v1451, %v1447
    %v1564 = vpack.c.b16 %v1452, %v1448
    %v1565 = vpack.c.b16 %v1457, %v1453
    %v1566 = vpack.c.b16 %v1458, %v1454
    %v1567 = vpack.c.b16 %v1459, %v1455
    %v1568 = vpack.c.b16 %v1460, %v1456
    %v1569 = vpack.c.b16 %v1465, %v1461
    %v1570 = vpack.c.b16 %v1466, %v1462
    %v1571 = vpack.c.b16 %v1467, %v1463
    %v1572 = vpack.c.b16 %v1468, %v1464
    %v1573 = vpack.c.b16 %v1473, %v1469
    %v1574 = vpack.c.b16 %v1474, %v1470
    %v1575 = vpack.c.b16 %v1475, %v1471
    %v1576 = vpack.c.b16 %v1476, %v1472
    %v1577 = vpack.c.b16 %v1481, %v1477
    %v1578 = vpack.c.b16 %v1482, %v1478
    %v1579 = vpack.c.b16 %v1483, %v1479
    %v1580 = vpack.c.b16 %v1484, %v1480
    %v1581 = vpack.c.b16 %v1489, %v1485
    %v1582 = vpack.c.b16 %v1490, %v1486
    %v1583 = vpack.c.b16 %v1491, %v1487
    %v1584 = vpack.c.b16 %v1492, %v1488
    %v1585 = vpack.c.b16 %v1497, %v1493
    %v1586 = vpack.c.b16 %v1498, %v1494
    %v1587 = vpack.c.b16 %v1499, %v1495
    %v1588 = vpack.c.b16 %v1500, %v1496
    %v1589 = vpack.c.b16 %v1505, %v1501
    %v1590 = vpack.c.b16 %v1506, %v1502
    %v1591 = vpack.c.b16 %v1507, %v1503
    %v1592 = vpack.c.b16 %v1508, %v1504
    %v1593 = vpack.c.b16 %v1513, %v1509
    %v1594 = vpack.c.b16 %v1514, %v1510
    %v1595 = vpack.c.b16 %v1515, %v1511
    %v1596 = vpack.c.b16 %v1516, %v1512
    %v1597 = vpack.c.b16 %v1521, %v1517
    %v1598 = vpack.c.b16 %v1522, %v1518
    %v1599 = vpack.c.b16 %v1523, %v1519
    %v1600 = vpack.c.b16 %v1524, %v1520
    %v1601 = vpack.c.b16 %v1529, %v1525
    %v1602 = vpack.c.b16 %v1530, %v1526
    %v1603 = vpack.c.b16 %v1531, %v1527
    %v1604 = vpack.c.b16 %v1532, %v1528
    %v1605 = vpack.c.b16 %v1537, %v1533
    %v1606 = vpack.c.b16 %v1538, %v1534
    %v1607 = vpack.c.b16 %v1539, %v1535
    %v1608 = vpack.c.b16 %v1540, %v1536
    %v1609 = vpack.c.b16 %v1545, %v1541
    %v1610 = vpack.c.b16 %v1546, %v1542
    %v1611 = vpack.c.b16 %v1547, %v1543
    %v1612 = vpack.c.b16 %v1548, %v1544
    %1677 = vmatpush.bf16.msra.mxu0 %v1577
    %1678 = vmatpush.bf16.msra.mxu0 %v1573
    %1679 = vmatpush.bf16.msra.mxu0 %v1569
    %1680 = vmatpush.bf16.msra.mxu0 %v1565
    %1681 = vmatpush.bf16.msra.mxu0 %v1561
    %1682 = vmatpush.bf16.msra.mxu0 %v1557
    %1683 = vmatpush.bf16.msra.mxu0 %v1553
    %1684 = vmatpush.bf16.msra.mxu0 %v1549
    %1685 = vmatmul.bf16.gmra.mxu0 %v1281
    %v1686 = vpop.f32.mrf.mxu0
    %v1687 = vadd.f32 %v1349, %v1686
    %v1688 = vpop.f32.mrf.mxu0
    %v1689 = vadd.f32 %v1349, %v1688
    %1690 = vdwg.mxu0
    %1691 = vmatpush.bf16.msra.mxu0 %v1609
    %1692 = vmatpush.bf16.msra.mxu0 %v1605
    %1693 = vmatpush.bf16.msra.mxu0 %v1601
    %1694 = vmatpush.bf16.msra.mxu0 %v1597
    %1695 = vmatpush.bf16.msra.mxu0 %v1593
    %1696 = vmatpush.bf16.msra.mxu0 %v1589
    %1697 = vmatpush.bf16.msra.mxu0 %v1585
    %1698 = vmatpush.bf16.msra.mxu0 %v1581
    %1699 = vmatmul.bf16.gmra.mxu0 %v1282
    %v1700 = vpop.f32.mrf.mxu0
    %v1701 = vadd.f32 %v1687, %v1700
    %v1702 = vpop.f32.mrf.mxu0
    %v1703 = vadd.f32 %v1689, %v1702
    %1704 = vdwg.mxu0
    %1705 = vmatpush.bf16.msra.mxu0 %v1578
    %1706 = vmatpush.bf16.msra.mxu0 %v1574
    %1707 = vmatpush.bf16.msra.mxu0 %v1570
    %1708 = vmatpush.bf16.msra.mxu0 %v1566
    %1709 = vmatpush.bf16.msra.mxu0 %v1562
    %1710 = vmatpush.bf16.msra.mxu0 %v1558
    %1711 = vmatpush.bf16.msra.mxu0 %v1554
    %1712 = vmatpush.bf16.msra.mxu0 %v1550
    %1713 = vmatmul.bf16.gmra.mxu0 %v1281
    %v1714 = vpop.f32.mrf.mxu0
    %v1715 = vadd.f32 %v1350, %v1714
    %v1716 = vpop.f32.mrf.mxu0
    %v1717 = vadd.f32 %v1350, %v1716
    %1718 = vdwg.mxu0
    %1719 = vmatpush.bf16.msra.mxu0 %v1610
    %1720 = vmatpush.bf16.msra.mxu0 %v1606
    %1721 = vmatpush.bf16.msra.mxu0 %v1602
    %1722 = vmatpush.bf16.msra.mxu0 %v1598
    %1723 = vmatpush.bf16.msra.mxu0 %v1594
    %1724 = vmatpush.bf16.msra.mxu0 %v1590
    %1725 = vmatpush.bf16.msra.mxu0 %v1586
    %1726 = vmatpush.bf16.msra.mxu0 %v1582
    %1727 = vmatmul.bf16.gmra.mxu0 %v1282
    %v1728 = vpop.f32.mrf.mxu0
    %v1729 = vadd.f32 %v1715, %v1728
    %v1730 = vpop.f32.mrf.mxu0
    %v1731 = vadd.f32 %v1717, %v1730
    %1732 = vdwg.mxu0
    %1733 = vmatpush.bf16.msra.mxu0 %v1579
    %1734 = vmatpush.bf16.msra.mxu0 %v1575
    %1735 = vmatpush.bf16.msra.mxu0 %v1571
    %1736 = vmatpush.bf16.msra.mxu0 %v1567
    %1737 = vmatpush.bf16.msra.mxu0 %v1563
    %1738 = vmatpush.bf16.msra.mxu0 %v1559
    %1739 = vmatpush.bf16.msra.mxu0 %v1555
    %1740 = vmatpush.bf16.msra.mxu0 %v1551
    %1741 = vmatmul.bf16.gmra.mxu0 %v1281
    %v1742 = vpop.f32.mrf.mxu0
    %v1743 = vadd.f32 %v1351, %v1742
    %v1744 = vpop.f32.mrf.mxu0
    %v1745 = vadd.f32 %v1351, %v1744
    %1746 = vdwg.mxu0
    %1747 = vmatpush.bf16.msra.mxu0 %v1611
    %1748 = vmatpush.bf16.msra.mxu0 %v1607
    %1749 = vmatpush.bf16.msra.mxu0 %v1603
    %1750 = vmatpush.bf16.msra.mxu0 %v1599
    %1751 = vmatpush.bf16.msra.mxu0 %v1595
    %1752 = vmatpush.bf16.msra.mxu0 %v1591
    %1753 = vmatpush.bf16.msra.mxu0 %v1587
    %1754 = vmatpush.bf16.msra.mxu0 %v1583
    %1755 = vmatmul.bf16.gmra.mxu0 %v1282
    %v1756 = vpop.f32.mrf.mxu0
    %v1757 = vadd.f32 %v1743, %v1756
    %v1758 = vpop.f32.mrf.mxu0
    %v1759 = vadd.f32 %v1745, %v1758
    %1760 = vdwg.mxu0
    %1761 = vmatpush.bf16.msra.mxu0 %v1580
    %1762 = vmatpush.bf16.msra.mxu0 %v1576
    %1763 = vmatpush.bf16.msra.mxu0 %v1572
    %1764 = vmatpush.bf16.msra.mxu0 %v1568
    %1765 = vmatpush.bf16.msra.mxu0 %v1564
    %1766 = vmatpush.bf16.msra.mxu0 %v1560
    %1767 = vmatpush.bf16.msra.mxu0 %v1556
    %1768 = vmatpush.bf16.msra.mxu0 %v1552
    %1769 = vmatmul.bf16.gmra.mxu0 %v1281
    %v1770 = vpop.f32.mrf.mxu0
    %v1771 = vadd.f32 %v1352, %v1770
    %v1772 = vpop.f32.mrf.mxu0
    %v1773 = vadd.f32 %v1352, %v1772
    %1774 = vdwg.mxu0
    %1775 = vmatpush.bf16.msra.mxu0 %v1612
    %1776 = vmatpush.bf16.msra.mxu0 %v1608
    %1777 = vmatpush.bf16.msra.mxu0 %v1604
    %1778 = vmatpush.bf16.msra.mxu0 %v1600
    %1779 = vmatpush.bf16.msra.mxu0 %v1596
    %1780 = vmatpush.bf16.msra.mxu0 %v1592
    %1781 = vmatpush.bf16.msra.mxu0 %v1588
    %1782 = vmatpush.bf16.msra.mxu0 %v1584
    %1783 = vmatmul.bf16.gmra.mxu0 %v1282
    %v1784 = vpop.f32.mrf.mxu0
    %v1785 = vadd.f32 %v1771, %v1784
    %v1786 = vpop.f32.mrf.mxu0
    %v1787 = vadd.f32 %v1773, %v1786
    %1788 = vdwg.mxu0
    %v1789 = vmax.f32 %v1701, 0.0
    %v1790 = vmax.f32 %v1729, 0.0
    %v1791 = vmax.f32 %v1757, 0.0
    %v1792 = vmax.f32 %v1785, 0.0
    %v1793 = vmax.f32 %v1703, 0.0
    %v1794 = vmax.f32 %v1731, 0.0
    %v1795 = vmax.f32 %v1759, 0.0
    %v1796 = vmax.f32 %v1787, 0.0
    %v1797 = vpack.c.bf16 %v1793, %v1789
    %v1798 = vpack.c.bf16 %v1794, %v1790
    %v1799 = vpack.c.bf16 %v1795, %v1791
    %v1800 = vpack.c.bf16 %v1796, %v1792
    %v1801 = vld [vmem:[#allocation7] sm:$0xf]
    %v1802 = vld [vmem:[#allocation7 + $0x4] sm:$0xf]
    %v1803 = vld [vmem:[#allocation7 + $0x8] sm:$0xf]
    %v1804 = vld [vmem:[#allocation7 + $0xc] sm:$0xf]
    %v1805 = vld [vmem:[#allocation7 + $0x10] sm:$0xf]
    %v1806 = vld [vmem:[#allocation7 + $0x14] sm:$0xf]
    %v1807 = vld [vmem:[#allocation7 + $0x18] sm:$0xf]
    %v1808 = vld [vmem:[#allocation7 + $0x1c] sm:$0xf]
    %v1809 = vld [vmem:[#allocation7 + $0x20] sm:$0xf]
    %v1810 = vld [vmem:[#allocation7 + $0x24] sm:$0xf]
    %v1811 = vld [vmem:[#allocation7 + $0x28] sm:$0xf]
    %v1812 = vld [vmem:[#allocation7 + $0x2c] sm:$0xf]
    %v1813 = vld [vmem:[#allocation7 + $0x30] sm:$0xf]
    %v1814 = vld [vmem:[#allocation7 + $0x34] sm:$0xf]
    %v1815 = vld [vmem:[#allocation7 + $0x38] sm:$0xf]
    %v1816 = vld [vmem:[#allocation7 + $0x3c] sm:$0xf]
    %v1817 = vld [vmem:[#allocation7 + $0x40] sm:$0xf]
    %v1818 = vld [vmem:[#allocation7 + $0x44] sm:$0xf]
    %v1819 = vld [vmem:[#allocation7 + $0x48] sm:$0xf]
    %v1820 = vld [vmem:[#allocation7 + $0x4c] sm:$0xf]
    %v1821 = vld [vmem:[#allocation7 + $0x50] sm:$0xf]
    %v1822 = vld [vmem:[#allocation7 + $0x54] sm:$0xf]
    %v1823 = vld [vmem:[#allocation7 + $0x58] sm:$0xf]
    %v1824 = vld [vmem:[#allocation7 + $0x5c] sm:$0xf]
    %v1825 = vld [vmem:[#allocation7 + $0x60] sm:$0xf]
    %v1826 = vld [vmem:[#allocation7 + $0x64] sm:$0xf]
    %v1827 = vld [vmem:[#allocation7 + $0x68] sm:$0xf]
    %v1828 = vld [vmem:[#allocation7 + $0x6c] sm:$0xf]
    %v1829 = vld [vmem:[#allocation7 + $0x70] sm:$0xf]
    %v1830 = vld [vmem:[#allocation7 + $0x74] sm:$0xf]
    %v1831 = vld [vmem:[#allocation7 + $0x78] sm:$0xf]
    %v1832 = vld [vmem:[#allocation7 + $0x7c] sm:$0xf]
    %v1833 = vld [vmem:[#allocation7 + $0x80] sm:$0xf]
    %v1834 = vld [vmem:[#allocation7 + $0x84] sm:$0xf]
    %v1835 = vld [vmem:[#allocation7 + $0x88] sm:$0xf]
    %v1836 = vld [vmem:[#allocation7 + $0x8c] sm:$0xf]
    %v1837 = vld [vmem:[#allocation7 + $0x90] sm:$0xf]
    %v1838 = vld [vmem:[#allocation7 + $0x94] sm:$0xf]
    %v1839 = vld [vmem:[#allocation7 + $0x98] sm:$0xf]
    %v1840 = vld [vmem:[#allocation7 + $0x9c] sm:$0xf]
    %v1841 = vld [vmem:[#allocation7 + $0xa0] sm:$0xf]
    %v1842 = vld [vmem:[#allocation7 + $0xa4] sm:$0xf]
    %v1843 = vld [vmem:[#allocation7 + $0xa8] sm:$0xf]
    %v1844 = vld [vmem:[#allocation7 + $0xac] sm:$0xf]
    %v1845 = vld [vmem:[#allocation7 + $0xb0] sm:$0xf]
    %v1846 = vld [vmem:[#allocation7 + $0xb4] sm:$0xf]
    %v1847 = vld [vmem:[#allocation7 + $0xb8] sm:$0xf]
    %v1848 = vld [vmem:[#allocation7 + $0xbc] sm:$0xf]
    %v1849 = vld [vmem:[#allocation7 + $0xc0] sm:$0xf]
    %v1850 = vld [vmem:[#allocation7 + $0xc4] sm:$0xf]
    %v1851 = vld [vmem:[#allocation7 + $0xc8] sm:$0xf]
    %v1852 = vld [vmem:[#allocation7 + $0xcc] sm:$0xf]
    %v1853 = vld [vmem:[#allocation7 + $0xd0] sm:$0xf]
    %v1854 = vld [vmem:[#allocation7 + $0xd4] sm:$0xf]
    %v1855 = vld [vmem:[#allocation7 + $0xd8] sm:$0xf]
    %v1856 = vld [vmem:[#allocation7 + $0xdc] sm:$0xf]
    %v1857 = vld [vmem:[#allocation7 + $0xe0] sm:$0xf]
    %v1858 = vld [vmem:[#allocation7 + $0xe4] sm:$0xf]
    %v1859 = vld [vmem:[#allocation7 + $0xe8] sm:$0xf]
    %v1860 = vld [vmem:[#allocation7 + $0xec] sm:$0xf]
    %v1861 = vld [vmem:[#allocation7 + $0xf0] sm:$0xf]
    %v1862 = vld [vmem:[#allocation7 + $0xf4] sm:$0xf]
    %v1863 = vld [vmem:[#allocation7 + $0xf8] sm:$0xf]
    %v1864 = vld [vmem:[#allocation7 + $0xfc] sm:$0xf]
    %v1865 = vld [vmem:[%s7] sm:$0x1]
    %v1867 = vperm.slane %v1865, 0
    %v1933 = vunpack.c.l.b16 %v1801
    %v1934 = vunpack.c.l.b16 %v1802
    %v1935 = vunpack.c.l.b16 %v1803
    %v1936 = vunpack.c.l.b16 %v1804
    %v1937 = vunpack.c.l.b16 %v1805
    %v1938 = vunpack.c.l.b16 %v1806
    %v1939 = vunpack.c.l.b16 %v1807
    %v1940 = vunpack.c.l.b16 %v1808
    %v1941 = vunpack.c.l.b16 %v1809
    %v1942 = vunpack.c.l.b16 %v1810
    %v1943 = vunpack.c.l.b16 %v1811
    %v1944 = vunpack.c.l.b16 %v1812
    %v1945 = vunpack.c.l.b16 %v1813
    %v1946 = vunpack.c.l.b16 %v1814
    %v1947 = vunpack.c.l.b16 %v1815
    %v1948 = vunpack.c.l.b16 %v1816
    %v1949 = vunpack.c.l.b16 %v1817
    %v1950 = vunpack.c.l.b16 %v1818
    %v1951 = vunpack.c.l.b16 %v1819
    %v1952 = vunpack.c.l.b16 %v1820
    %v1953 = vunpack.c.l.b16 %v1821
    %v1954 = vunpack.c.l.b16 %v1822
    %v1955 = vunpack.c.l.b16 %v1823
    %v1956 = vunpack.c.l.b16 %v1824
    %v1957 = vunpack.c.l.b16 %v1825
    %v1958 = vunpack.c.l.b16 %v1826
    %v1959 = vunpack.c.l.b16 %v1827
    %v1960 = vunpack.c.l.b16 %v1828
    %v1961 = vunpack.c.l.b16 %v1829
    %v1962 = vunpack.c.l.b16 %v1830
    %v1963 = vunpack.c.l.b16 %v1831
    %v1964 = vunpack.c.l.b16 %v1832
    %v1965 = vunpack.c.l.b16 %v1833
    %v1966 = vunpack.c.l.b16 %v1834
    %v1967 = vunpack.c.l.b16 %v1835
    %v1968 = vunpack.c.l.b16 %v1836
    %v1969 = vunpack.c.l.b16 %v1837
    %v1970 = vunpack.c.l.b16 %v1838
    %v1971 = vunpack.c.l.b16 %v1839
    %v1972 = vunpack.c.l.b16 %v1840
    %v1973 = vunpack.c.l.b16 %v1841
    %v1974 = vunpack.c.l.b16 %v1842
    %v1975 = vunpack.c.l.b16 %v1843
    %v1976 = vunpack.c.l.b16 %v1844
    %v1977 = vunpack.c.l.b16 %v1845
    %v1978 = vunpack.c.l.b16 %v1846
    %v1979 = vunpack.c.l.b16 %v1847
    %v1980 = vunpack.c.l.b16 %v1848
    %v1981 = vunpack.c.l.b16 %v1849
    %v1982 = vunpack.c.l.b16 %v1850
    %v1983 = vunpack.c.l.b16 %v1851
    %v1984 = vunpack.c.l.b16 %v1852
    %v1985 = vunpack.c.l.b16 %v1853
    %v1986 = vunpack.c.l.b16 %v1854
    %v1987 = vunpack.c.l.b16 %v1855
    %v1988 = vunpack.c.l.b16 %v1856
    %v1989 = vunpack.c.l.b16 %v1857
    %v1990 = vunpack.c.l.b16 %v1858
    %v1991 = vunpack.c.l.b16 %v1859
    %v1992 = vunpack.c.l.b16 %v1860
    %v1993 = vunpack.c.l.b16 %v1861
    %v1994 = vunpack.c.l.b16 %v1862
    %v1995 = vunpack.c.l.b16 %v1863
    %v1996 = vunpack.c.l.b16 %v1864
    %v1997 = vpack.c.b16 %v1934, %v1933
    %v1998 = vpack.c.b16 %v1936, %v1935
    %v1999 = vpack.c.b16 %v1938, %v1937
    %v2000 = vpack.c.b16 %v1940, %v1939
    %v2001 = vpack.c.b16 %v1942, %v1941
    %v2002 = vpack.c.b16 %v1944, %v1943
    %v2003 = vpack.c.b16 %v1946, %v1945
    %v2004 = vpack.c.b16 %v1948, %v1947
    %v2005 = vpack.c.b16 %v1950, %v1949
    %v2006 = vpack.c.b16 %v1952, %v1951
    %v2007 = vpack.c.b16 %v1954, %v1953
    %v2008 = vpack.c.b16 %v1956, %v1955
    %v2009 = vpack.c.b16 %v1958, %v1957
    %v2010 = vpack.c.b16 %v1960, %v1959
    %v2011 = vpack.c.b16 %v1962, %v1961
    %v2012 = vpack.c.b16 %v1964, %v1963
    %v2013 = vpack.c.b16 %v1966, %v1965
    %v2014 = vpack.c.b16 %v1968, %v1967
    %v2015 = vpack.c.b16 %v1970, %v1969
    %v2016 = vpack.c.b16 %v1972, %v1971
    %v2017 = vpack.c.b16 %v1974, %v1973
    %v2018 = vpack.c.b16 %v1976, %v1975
    %v2019 = vpack.c.b16 %v1978, %v1977
    %v2020 = vpack.c.b16 %v1980, %v1979
    %v2021 = vpack.c.b16 %v1982, %v1981
    %v2022 = vpack.c.b16 %v1984, %v1983
    %v2023 = vpack.c.b16 %v1986, %v1985
    %v2024 = vpack.c.b16 %v1988, %v1987
    %v2025 = vpack.c.b16 %v1990, %v1989
    %v2026 = vpack.c.b16 %v1992, %v1991
    %v2027 = vpack.c.b16 %v1994, %v1993
    %v2028 = vpack.c.b16 %v1996, %v1995
    %2061 = vmatpush.bf16.msra.mxu0 %v2004
    %2062 = vmatpush.bf16.msra.mxu0 %v2003
    %2063 = vmatpush.bf16.msra.mxu0 %v2002
    %2064 = vmatpush.bf16.msra.mxu0 %v2001
    %2065 = vmatpush.bf16.msra.mxu0 %v2000
    %2066 = vmatpush.bf16.msra.mxu0 %v1999
    %2067 = vmatpush.bf16.msra.mxu0 %v1998
    %2068 = vmatpush.bf16.msra.mxu0 %v1997
    %2069 = vmatmul.bf16.gmra.mxu0 %v1797
    %v2070 = vpop.f32.mrf.mxu0
    %v2071 = vadd.f32 %v1867, %v2070
    %v2072 = vpop.f32.mrf.mxu0
    %v2073 = vadd.f32 %v1867, %v2072
    %2074 = vdwg.mxu0
    %2075 = vmatpush.bf16.msra.mxu0 %v2012
    %2076 = vmatpush.bf16.msra.mxu0 %v2011
    %2077 = vmatpush.bf16.msra.mxu0 %v2010
    %2078 = vmatpush.bf16.msra.mxu0 %v2009
    %2079 = vmatpush.bf16.msra.mxu0 %v2008
    %2080 = vmatpush.bf16.msra.mxu0 %v2007
    %2081 = vmatpush.bf16.msra.mxu0 %v2006
    %2082 = vmatpush.bf16.msra.mxu0 %v2005
    %2083 = vmatmul.bf16.gmra.mxu0 %v1798
    %v2084 = vpop.f32.mrf.mxu0
    %v2085 = vadd.f32 %v2071, %v2084
    %v2086 = vpop.f32.mrf.mxu0
    %v2087 = vadd.f32 %v2073, %v2086
    %2088 = vdwg.mxu0
    %2089 = vmatpush.bf16.msra.mxu0 %v2020
    %2090 = vmatpush.bf16.msra.mxu0 %v2019
    %2091 = vmatpush.bf16.msra.mxu0 %v2018
    %2092 = vmatpush.bf16.msra.mxu0 %v2017
    %2093 = vmatpush.bf16.msra.mxu0 %v2016
    %2094 = vmatpush.bf16.msra.mxu0 %v2015
    %2095 = vmatpush.bf16.msra.mxu0 %v2014
    %2096 = vmatpush.bf16.msra.mxu0 %v2013
    %2097 = vmatmul.bf16.gmra.mxu0 %v1799
    %v2098 = vpop.f32.mrf.mxu0
    %v2099 = vadd.f32 %v2085, %v2098
    %v2100 = vpop.f32.mrf.mxu0
    %v2101 = vadd.f32 %v2087, %v2100
    %2102 = vdwg.mxu0
    %2103 = vmatpush.bf16.msra.mxu0 %v2028
    %2104 = vmatpush.bf16.msra.mxu0 %v2027
    %2105 = vmatpush.bf16.msra.mxu0 %v2026
    %2106 = vmatpush.bf16.msra.mxu0 %v2025
    %2107 = vmatpush.bf16.msra.mxu0 %v2024
    %2108 = vmatpush.bf16.msra.mxu0 %v2023
    %2109 = vmatpush.bf16.msra.mxu0 %v2022
    %2110 = vmatpush.bf16.msra.mxu0 %v2021
    %2111 = vmatmul.bf16.gmra.mxu0 %v1800
    %v2112 = vpop.f32.mrf.mxu0
    %v2113 = vadd.f32 %v2099, %v2112
    %v2114 = vpop.f32.mrf.mxu0
    %v2115 = vadd.f32 %v2101, %v2114
    %2116 = vdwg.mxu0
    %v2117 = vmul.f32 %v2113, 0.25
    %v2118 = vmul.f32 %v2115, 0.25
    %2120 = vset.pattern.permute.xlu0 4
    %2121 = vperm.xlu0 %2120, %v2113
    %v2122 = vpop.permute.xlu0 %2121
    %2125 = vset.pattern.permute.xlu0 4
    %2126 = vperm.xlu0 %2125, %v2115
    %v2127 = vpop.permute.xlu0 %2126
    %v2129 = vadd.f32 %v2113, %v2122
    %v2130 = vadd.f32 %v2115, %v2127
    %2132 = vset.pattern.permute.xlu0 5
    %2133 = vperm.xlu0 %2132, %v2117
    %v2134 = vpop.permute.xlu0 %2133
    %2137 = vset.pattern.permute.xlu0 5
    %2138 = vperm.xlu0 %2137, %v2118
    %v2139 = vpop.permute.xlu0 %2138
    %v2141 = vsub.f32 %v2129, %v2134
    %v2142 = vsub.f32 %v2130, %v2139
    %v2143 = vpack.c.bf16 %v2141, %v2141
    %v2144 = vpack.c.bf16 %v2142, %v2142
    %2145 = vst [vmem:[%s8] sm:$0xf] %v2143
    %2146 = vst [vmem:[%s8 + $0x4] sm:$0xf] %v2144
    // Predicated region
    $region50: #{mhdqn_forward.1} parent=1 // pred_check
      _
    $region51: #{mhdqn_forward.1} parent=1 // pred_check_branch
      %2148 = sbr.rel (0) target = $region53
    $region52: #{mhdqn_forward.1} parent=1 // pred_region
      _
    $region53: #{mhdqn_forward.1} parent=1 // pred_fallthru
      _
    // Predicated region
    $region54: #{mhdqn_forward.1} parent=1 // pred_check
      _
    $region55: #{mhdqn_forward.1} parent=1 // pred_check_branch
      %2150 = sbr.rel (0) target = $region57
    $region56: #{mhdqn_forward.1} parent=1 // pred_region
      _
    $region57: #{mhdqn_forward.1} parent=1 // pred_fallthru
      _
    %2151 = vsyncpa [#allocation3], 1
    %2152 = vsyncpa [#allocation5], 1
    %2153 = vsyncpa [#allocation8], 1

</llo_original>
